<compile_context>
chip_gen: v6e
topology: v6e:2x2x1
jax: 0.10.0
libtpu: 0.0.40
codegen_flags: <defaults>
</compile_context>

<pallas_src>
import jax
import jax.numpy as jnp
from jax import lax
from jax.experimental import pallas as pl
from jax.experimental.pallas import tpu as pltpu

KTH = 10          # cc_kth_p hard-codes kth = 10
EPS = 1e-5        # InstanceNorm2d default eps


def _intra_adr_kernel(x_ref, w_ref, b_ref, branch_ref, out_ref):
    # x_ref:      (1, Cin, HW)
    # w_ref:      (4*Cout, Cin)    kernel-position-major stacked ConvT weight
    # b_ref:      (4*Cout, 1)      bias tiled over the 4 kernel positions
    # branch_ref: (1, 4, Cout, HW) IN+ReLU activations (kpos-major layout)
    # out_ref:    (1, 4, 1, HW)    mean of top-10 softmax probs over channels
    x = x_ref[0]                                    # (Cin, HW)
    Cout = branch_ref.shape[2]
    HW = x.shape[1]
    inv_n = 1.0 / (4.0 * HW)

    # --- ConvTranspose2d(k=2, s=2): single MXU matmul, no lane concatenate ---
    z = jnp.dot(w_ref[...], x, preferred_element_type=jnp.float32) + b_ref[...]
    # four (Cout, HW) kernel-position slabs; static, sublane-aligned when Cout % 8 == 0
    zk = [z[k * Cout:(k + 1) * Cout, :] for k in range(4)]

    # --- InstanceNorm2d (affine=False, biased variance) over all 4*HW positions ---
    mean = jnp.sum(zk[0] + zk[1] + zk[2] + zk[3], axis=1, keepdims=True) * inv_n
    dk = [zk[k] - mean for k in range(4)]
    var = jnp.sum(dk[0] * dk[0] + dk[1] * dk[1] + dk[2] * dk[2] + dk[3] * dk[3],
                  axis=1, keepdims=True) * inv_n
    rstd = lax.rsqrt(var + EPS)
    yk = [jnp.maximum(dk[k] * rstd, 0.0) for k in range(4)]        # + ReLU
    for k in range(4):
        branch_ref[0, k] = yk[k]

    # --- softmax per channel over the full (2H)*(2W) spatial extent ---
    m = jnp.max(jnp.maximum(jnp.maximum(yk[0], yk[1]), jnp.maximum(yk[2], yk[3])),
                axis=1, keepdims=True)                             # (Cout, 1)
    ek = [jnp.exp(yk[k] - m) for k in range(4)]
    denom = jnp.sum(ek[0] + ek[1] + ek[2] + ek[3], axis=1, keepdims=True)
    inv_denom = pl.reciprocal(denom, approx=True)                  # EUP slot (free-ish)

    # --- top-KTH over channels at each spatial position, then mean of the KTH ---
    ch_ids = lax.broadcasted_iota(jnp.int32, (Cout, HW), 0)
    n_drop = Cout - KTH
    for k in range(4):
        p = ek[k] * inv_denom                                      # (Cout, HW)
        if n_drop < KTH:
            # complement: sum(all channels) - sum(bottom n_drop)  -> fewer XLU iters
            acc = jnp.sum(p, axis=0, keepdims=True)                # (1, HW)
            work = p
            for _ in range(n_drop):
                cur = jnp.min(work, axis=0, keepdims=True)
                acc = acc - cur
                # knock out exactly one occurrence of the current extremum (ties!)
                first = jnp.min(jnp.where(work == cur, ch_ids, Cout),
                                axis=0, keepdims=True)
                work = jnp.where(ch_ids == first, jnp.float32(1e30), work)
        else:
            # direct accumulation of the top-KTH values
            acc = jnp.zeros((1, HW), jnp.float32)
            work = p
            for _ in range(KTH):
                cur = jnp.max(work, axis=0, keepdims=True)
                acc = acc + cur
                first = jnp.min(jnp.where(work == cur, ch_ids, Cout),
                                axis=0, keepdims=True)
                work = jnp.where(ch_ids == first, jnp.float32(-1e30), work)
        out_ref[0, k] = acc * (1.0 / KTH)


def intra_adr_pallas(x, weight, bias):
    """x: (B, Cin, H, W) NCHW; weight: (Cin, Cout, 2, 2); bias: (Cout,)."""
    B, Cin, H, W = x.shape
    Cout = weight.shape[1]
    assert Cout >= KTH, "cc_kth_p takes top-10 over channels -> need outp >= 10"
    HW = H * W

    x_k = x.reshape(B, Cin, HW).astype(jnp.float32)
    # (Cin, Cout, ki, kj) -> (ki, kj, Cout, Cin) -> (4*Cout, Cin), rows kpos-major
    w_k = jnp.transpose(weight, (2, 3, 1, 0)).reshape(4 * Cout, Cin).astype(jnp.float32)
    b_k = jnp.tile(bias.astype(jnp.float32), 4).reshape(4 * Cout, 1)

    branch_k, out_k = pl.pallas_call(
        _intra_adr_kernel,
        out_shape=(
            jax.ShapeDtypeStruct((B, 4, Cout, HW), jnp.float32),
            jax.ShapeDtypeStruct((B, 4, 1, HW), jnp.float32),
        ),
        grid=(B,),
        in_specs=[
            pl.BlockSpec((1, Cin, HW), lambda b: (b, 0, 0)),
            # constant block indices -> Pallas skips re-DMA across grid steps
            pl.BlockSpec((4 * Cout, Cin), lambda b: (0, 0)),
            pl.BlockSpec((4 * Cout, 1), lambda b: (0, 0)),
        ],
        out_specs=(
            pl.BlockSpec((1, 4, Cout, HW), lambda b: (b, 0, 0, 0)),
            pl.BlockSpec((1, 4, 1, HW), lambda b: (b, 0, 0, 0)),
        ),
        # parallel batch axis: shards across the 2 TensorCores on v7x; no-op on v5e/v6e
        compiler_params=pltpu.CompilerParams(dimension_semantics=("parallel",)),
    )(x_k, w_k, b_k)

    # Reorder kernel-position-major layout back to NCHW (2H, 2W).
    def unpermute(a, c):
        a = a.reshape(B, 2, 2, c, H, W)              # (b, ki, kj, c, i, j)
        a = jnp.transpose(a, (0, 3, 4, 1, 5, 2))     # (b, c, i, ki, j, kj)
        return a.reshape(B, c, 2 * H, 2 * W)

    branch2 = unpermute(branch_k, Cout)                      # (B, Cout, 2H, 2W)
    branch_out = unpermute(out_k, 1).reshape(B, 1, 4 * HW)   # (B, 1, (2H)*(2W))
    # forward returns (branch_out, branch2, x_adr) where branch2 is x_adr
    return branch_out, branch2, branch2


def _reference(x, weight, bias):
    """Pure-JAX replica of the PyTorch forward (for verification)."""
    B, Cin, H, W = x.shape
    Cout = weight.shape[1]
    y = jnp.einsum('bchw,cokl->boklhw', x, weight)
    y = jnp.transpose(y, (0, 1, 4, 2, 5, 3)).reshape(B, Cout, 2 * H, 2 * W)
    y = y + bias[None, :, None, None]
    mean = y.mean(axis=(2, 3), keepdims=True)
    var = ((y - mean) ** 2).mean(axis=(2, 3), keepdims=True)
    y = jnp.maximum((y - mean) / jnp.sqrt(var + EPS), 0.0)
    branch2 = y
    flat = y.reshape(B, Cout, -1)
    p = jax.nn.softmax(flat, axis=2)
    topv = lax.top_k(jnp.swapaxes(p, 1, 2), KTH)[0]      # (B, S, KTH) values
    branch_out = topv.mean(-1)[:, None, :]
    return branch_out, branch2


if __name__ == "__main__":
    # outp (=channels) must be >= 10 because cc_kth_p takes top-10 over channels.
    B, C, H, W = 2, 16, 8, 8
    key = jax.random.PRNGKey(0)
    kx, kw, kb = jax.random.split(key, 3)
    x = jax.random.normal(kx, (B, C, H, W), dtype=jnp.float32)
    # ConvTranspose2d weight shape: (in_channels, out_channels, kH, kW)
    weight = 0.2 * jax.random.normal(kw, (C, C, 2, 2), dtype=jnp.float32)
    bias = 0.05 * jax.random.normal(kb, (C,), dtype=jnp.float32)

    branch_out, branch2, x_adr = jax.block_until_ready(
        intra_adr_pallas(x, weight, bias))

    ref_out, ref_branch2 = _reference(x, weight, bias)
    assert branch_out.shape == (B, 1, (2 * H) * (2 * W))
    assert branch2.shape == (B, C, 2 * H, 2 * W)
    assert jnp.allclose(branch2, ref_branch2, atol=1e-4, rtol=1e-4)
    # rtol loosened (was 1e-4) to absorb the relative error of the approximate
    # EUP reciprocal used for the softmax denominator.
    assert jnp.allclose(branch_out, ref_out, atol=1e-5, rtol=2e-3)
    print("KERNEL_OK")
</pallas_src>

<mosaic_0001>
module attributes {stable_mosaic.version = 11 : i64} {
  func.func @_intra_adr_kernel(%arg0: i32, %arg1: memref<1x16x64xf32, #tpu.memory_space<vmem>>, %arg2: memref<64x16xf32, #tpu.memory_space<vmem>>, %arg3: memref<64x1xf32, #tpu.memory_space<vmem>>, %arg4: memref<1x4x16x64xf32, #tpu.memory_space<vmem>>, %arg5: memref<1x4x1x64xf32, #tpu.memory_space<vmem>>) attributes {dimension_semantics = [#tpu.dimension_semantics<parallel>], iteration_bounds = array<i64: 2>, scalar_prefetch = 0 : i64, scratch_operands = 0 : i64, tpu.core_type = #tpu.core_type<tc>, window_params = [{transform_indices = @transform_0, window_bounds = array<i64: 1, 16, 64>}, {pipeline_mode = #tpu.pipeline_mode<synchronous>, transform_indices = @transform_1, window_bounds = array<i64: 64, 16>}, {pipeline_mode = #tpu.pipeline_mode<synchronous>, transform_indices = @transform_2, window_bounds = array<i64: 64, 1>}, {transform_indices = @transform_3, window_bounds = array<i64: 1, 4, 16, 64>}, {transform_indices = @transform_4, window_bounds = array<i64: 1, 4, 1, 64>}]} {
    %c0 = arith.constant 0 : index
    %c0_0 = arith.constant 0 : index
    %c0_1 = arith.constant 0 : index
    %0 = vector.load %arg1[%c0, %c0_0, %c0_1] : memref<1x16x64xf32, #tpu.memory_space<vmem>>, vector<1x16x64xf32>
    %1 = vector.shape_cast %0 : vector<1x16x64xf32> to vector<16x64xf32>
    %c0_2 = arith.constant 0 : index
    %c0_3 = arith.constant 0 : index
    %2 = vector.load %arg2[%c0_2, %c0_3] : memref<64x16xf32, #tpu.memory_space<vmem>>, vector<64x16xf32>
    %cst = arith.constant dense<0.000000e+00> : vector<64x64xf32>
    %3 = tpu.matmul %2, %1, %cst {dimension_numbers = #tpu.dot_dimension_numbers<[1], [0], [0], [1], [0, 0, 1, 1], [], []>} : vector<64x16xf32>, vector<16x64xf32>, vector<64x64xf32> -> vector<64x64xf32>
    %c0_4 = arith.constant 0 : index
    %c0_5 = arith.constant 0 : index
    %4 = vector.load %arg3[%c0_4, %c0_5] : memref<64x1xf32, #tpu.memory_space<vmem>>, vector<64x1xf32>
    %5 = vector.broadcast %4 : vector<64x1xf32> to vector<64x64xf32>
    %6 = arith.addf %3, %5 : vector<64x64xf32>
    %7 = vector.extract_strided_slice %6 {offsets = [0, 0], sizes = [16, 64], strides = [1, 1]} : vector<64x64xf32> to vector<16x64xf32>
    %8 = vector.extract_strided_slice %6 {offsets = [16, 0], sizes = [16, 64], strides = [1, 1]} : vector<64x64xf32> to vector<16x64xf32>
    %9 = vector.extract_strided_slice %6 {offsets = [32, 0], sizes = [16, 64], strides = [1, 1]} : vector<64x64xf32> to vector<16x64xf32>
    %10 = vector.extract_strided_slice %6 {offsets = [48, 0], sizes = [16, 64], strides = [1, 1]} : vector<64x64xf32> to vector<16x64xf32>
    %11 = arith.addf %7, %8 : vector<16x64xf32>
    %12 = arith.addf %11, %9 : vector<16x64xf32>
    %13 = arith.addf %12, %10 : vector<16x64xf32>
    %cst_6 = arith.constant dense<0.000000e+00> : vector<16xf32>
    %14 = vector.multi_reduction <add>, %13, %cst_6 [1] : vector<16x64xf32> to vector<16xf32>
    %15 = vector.shape_cast %14 : vector<16xf32> to vector<16x1xf32>
    %cst_7 = arith.constant 3.906250e-03 : f32
    %16 = vector.broadcast %cst_7 : f32 to vector<16x1xf32>
    %17 = arith.mulf %15, %16 : vector<16x1xf32>
    %18 = vector.broadcast %17 : vector<16x1xf32> to vector<16x64xf32>
    %19 = arith.subf %7, %18 : vector<16x64xf32>
    %20 = vector.broadcast %17 : vector<16x1xf32> to vector<16x64xf32>
    %21 = arith.subf %8, %20 : vector<16x64xf32>
    %22 = vector.broadcast %17 : vector<16x1xf32> to vector<16x64xf32>
    %23 = arith.subf %9, %22 : vector<16x64xf32>
    %24 = vector.broadcast %17 : vector<16x1xf32> to vector<16x64xf32>
    %25 = arith.subf %10, %24 : vector<16x64xf32>
    %26 = arith.mulf %19, %19 : vector<16x64xf32>
    %27 = arith.mulf %21, %21 : vector<16x64xf32>
    %28 = arith.addf %26, %27 : vector<16x64xf32>
    %29 = arith.mulf %23, %23 : vector<16x64xf32>
    %30 = arith.addf %28, %29 : vector<16x64xf32>
    %31 = arith.mulf %25, %25 : vector<16x64xf32>
    %32 = arith.addf %30, %31 : vector<16x64xf32>
    %cst_8 = arith.constant dense<0.000000e+00> : vector<16xf32>
    %33 = vector.multi_reduction <add>, %32, %cst_8 [1] : vector<16x64xf32> to vector<16xf32>
    %34 = vector.shape_cast %33 : vector<16xf32> to vector<16x1xf32>
    %cst_9 = arith.constant 3.906250e-03 : f32
    %35 = vector.broadcast %cst_9 : f32 to vector<16x1xf32>
    %36 = arith.mulf %34, %35 : vector<16x1xf32>
    %cst_10 = arith.constant 9.99999974E-6 : f32
    %37 = vector.broadcast %cst_10 : f32 to vector<16x1xf32>
    %38 = arith.addf %36, %37 : vector<16x1xf32>
    %39 = math.rsqrt %38 : vector<16x1xf32>
    %40 = vector.broadcast %39 : vector<16x1xf32> to vector<16x64xf32>
    %41 = arith.mulf %19, %40 : vector<16x64xf32>
    %cst_11 = arith.constant 0.000000e+00 : f32
    %42 = vector.broadcast %cst_11 : f32 to vector<16x64xf32>
    %43 = arith.maximumf %41, %42 : vector<16x64xf32>
    %44 = vector.broadcast %39 : vector<16x1xf32> to vector<16x64xf32>
    %45 = arith.mulf %21, %44 : vector<16x64xf32>
    %cst_12 = arith.constant 0.000000e+00 : f32
    %46 = vector.broadcast %cst_12 : f32 to vector<16x64xf32>
    %47 = arith.maximumf %45, %46 : vector<16x64xf32>
    %48 = vector.broadcast %39 : vector<16x1xf32> to vector<16x64xf32>
    %49 = arith.mulf %23, %48 : vector<16x64xf32>
    %cst_13 = arith.constant 0.000000e+00 : f32
    %50 = vector.broadcast %cst_13 : f32 to vector<16x64xf32>
    %51 = arith.maximumf %49, %50 : vector<16x64xf32>
    %52 = vector.broadcast %39 : vector<16x1xf32> to vector<16x64xf32>
    %53 = arith.mulf %25, %52 : vector<16x64xf32>
    %cst_14 = arith.constant 0.000000e+00 : f32
    %54 = vector.broadcast %cst_14 : f32 to vector<16x64xf32>
    %55 = arith.maximumf %53, %54 : vector<16x64xf32>
    %c0_15 = arith.constant 0 : index
    %c0_16 = arith.constant 0 : index
    %c0_17 = arith.constant 0 : index
    %c0_18 = arith.constant 0 : index
    %56 = vector.load %arg4[%c0_15, %c0_16, %c0_17, %c0_18] : memref<1x4x16x64xf32, #tpu.memory_space<vmem>>, vector<1x1x16x64xf32>
    %57 = vector.shape_cast %56 : vector<1x1x16x64xf32> to vector<16x64xf32>
    %58 = vector.shape_cast %43 : vector<16x64xf32> to vector<1x1x16x64xf32>
    tpu.vector_store %arg4[%c0_15, %c0_16, %c0_17, %c0_18], %58 {strides = array<i32>} : memref<1x4x16x64xf32, #tpu.memory_space<vmem>>, vector<1x1x16x64xf32>,
    %c0_19 = arith.constant 0 : index
    %c1 = arith.constant 1 : index
    %c0_20 = arith.constant 0 : index
    %c0_21 = arith.constant 0 : index
    %59 = vector.load %arg4[%c0_19, %c1, %c0_20, %c0_21] : memref<1x4x16x64xf32, #tpu.memory_space<vmem>>, vector<1x1x16x64xf32>
    %60 = vector.shape_cast %59 : vector<1x1x16x64xf32> to vector<16x64xf32>
    %61 = vector.shape_cast %47 : vector<16x64xf32> to vector<1x1x16x64xf32>
    tpu.vector_store %arg4[%c0_19, %c1, %c0_20, %c0_21], %61 {strides = array<i32>} : memref<1x4x16x64xf32, #tpu.memory_space<vmem>>, vector<1x1x16x64xf32>,
    %c0_22 = arith.constant 0 : index
    %c2 = arith.constant 2 : index
    %c0_23 = arith.constant 0 : index
    %c0_24 = arith.constant 0 : index
    %62 = vector.load %arg4[%c0_22, %c2, %c0_23, %c0_24] : memref<1x4x16x64xf32, #tpu.memory_space<vmem>>, vector<1x1x16x64xf32>
    %63 = vector.shape_cast %62 : vector<1x1x16x64xf32> to vector<16x64xf32>
    %64 = vector.shape_cast %51 : vector<16x64xf32> to vector<1x1x16x64xf32>
    tpu.vector_store %arg4[%c0_22, %c2, %c0_23, %c0_24], %64 {strides = array<i32>} : memref<1x4x16x64xf32, #tpu.memory_space<vmem>>, vector<1x1x16x64xf32>,
    %c0_25 = arith.constant 0 : index
    %c3 = arith.constant 3 : index
    %c0_26 = arith.constant 0 : index
    %c0_27 = arith.constant 0 : index
    %65 = vector.load %arg4[%c0_25, %c3, %c0_26, %c0_27] : memref<1x4x16x64xf32, #tpu.memory_space<vmem>>, vector<1x1x16x64xf32>
    %66 = vector.shape_cast %65 : vector<1x1x16x64xf32> to vector<16x64xf32>
    %67 = vector.shape_cast %55 : vector<16x64xf32> to vector<1x1x16x64xf32>
    tpu.vector_store %arg4[%c0_25, %c3, %c0_26, %c0_27], %67 {strides = array<i32>} : memref<1x4x16x64xf32, #tpu.memory_space<vmem>>, vector<1x1x16x64xf32>,
    %68 = arith.maximumf %43, %47 : vector<16x64xf32>
    %69 = arith.maximumf %51, %55 : vector<16x64xf32>
    %70 = arith.maximumf %68, %69 : vector<16x64xf32>
    %cst_28 = arith.constant dense<0xFF800000> : vector<16xf32>
    %71 = vector.multi_reduction <maximumf>, %70, %cst_28 [1] : vector<16x64xf32> to vector<16xf32>
    %72 = vector.shape_cast %71 : vector<16xf32> to vector<16x1xf32>
    %73 = vector.broadcast %72 : vector<16x1xf32> to vector<16x64xf32>
    %74 = arith.subf %43, %73 : vector<16x64xf32>
    %75 = math.exp %74 : vector<16x64xf32>
    %76 = vector.broadcast %72 : vector<16x1xf32> to vector<16x64xf32>
    %77 = arith.subf %47, %76 : vector<16x64xf32>
    %78 = math.exp %77 : vector<16x64xf32>
    %79 = vector.broadcast %72 : vector<16x1xf32> to vector<16x64xf32>
    %80 = arith.subf %51, %79 : vector<16x64xf32>
    %81 = math.exp %80 : vector<16x64xf32>
    %82 = vector.broadcast %72 : vector<16x1xf32> to vector<16x64xf32>
    %83 = arith.subf %55, %82 : vector<16x64xf32>
    %84 = math.exp %83 : vector<16x64xf32>
    %85 = arith.addf %75, %78 : vector<16x64xf32>
    %86 = arith.addf %85, %81 : vector<16x64xf32>
    %87 = arith.addf %86, %84 : vector<16x64xf32>
    %cst_29 = arith.constant dense<0.000000e+00> : vector<16xf32>
    %88 = vector.multi_reduction <add>, %87, %cst_29 [1] : vector<16x64xf32> to vector<16xf32>
    %89 = vector.shape_cast %88 : vector<16xf32> to vector<16x1xf32>
    %90 = tpu.reciprocal %89 {approx = true} : vector<16x1xf32> -> vector<16x1xf32>
    %91 = tpu.iota {dimensions = array<i32: 0>} : vector<16x64xi32>
    %92 = vector.broadcast %90 : vector<16x1xf32> to vector<16x64xf32>
    %93 = arith.mulf %75, %92 : vector<16x64xf32>
    %cst_30 = arith.constant dense<0.000000e+00> : vector<64xf32>
    %94 = vector.multi_reduction <add>, %93, %cst_30 [0] : vector<16x64xf32> to vector<64xf32>
    %95 = vector.shape_cast %94 : vector<64xf32> to vector<1x64xf32>
    %cst_31 = arith.constant dense<0x7F800000> : vector<64xf32>
    %96 = vector.multi_reduction <minimumf>, %93, %cst_31 [0] : vector<16x64xf32> to vector<64xf32>
    %97 = vector.shape_cast %96 : vector<64xf32> to vector<1x64xf32>
    %98 = arith.subf %95, %97 : vector<1x64xf32>
    %99 = vector.broadcast %97 : vector<1x64xf32> to vector<16x64xf32>
    %100 = arith.cmpf oeq, %93, %99 : vector<16x64xf32>
    %c16_i32 = arith.constant 16 : i32
    %101 = vector.broadcast %c16_i32 : i32 to vector<16x64xi32>
    %102 = arith.select %100, %91, %101 : vector<16x64xi1>, vector<16x64xi32>
    %cst_32 = arith.constant dense<2147483647> : vector<64xi32>
    %103 = vector.multi_reduction <minsi>, %102, %cst_32 [0] : vector<16x64xi32> to vector<64xi32>
    %104 = vector.shape_cast %103 : vector<64xi32> to vector<1x64xi32>
    %105 = vector.broadcast %104 : vector<1x64xi32> to vector<16x64xi32>
    %106 = arith.cmpi eq, %91, %105 : vector<16x64xi32>
    %cst_33 = arith.constant 1.000000e+30 : f32
    %107 = vector.broadcast %cst_33 : f32 to vector<16x64xf32>
    %108 = arith.select %106, %107, %93 : vector<16x64xi1>, vector<16x64xf32>
    %cst_34 = arith.constant dense<0x7F800000> : vector<64xf32>
    %109 = vector.multi_reduction <minimumf>, %108, %cst_34 [0] : vector<16x64xf32> to vector<64xf32>
    %110 = vector.shape_cast %109 : vector<64xf32> to vector<1x64xf32>
    %111 = arith.subf %98, %110 : vector<1x64xf32>
    %112 = vector.broadcast %110 : vector<1x64xf32> to vector<16x64xf32>
    %113 = arith.cmpf oeq, %108, %112 : vector<16x64xf32>
    %c16_i32_35 = arith.constant 16 : i32
    %114 = vector.broadcast %c16_i32_35 : i32 to vector<16x64xi32>
    %115 = arith.select %113, %91, %114 : vector<16x64xi1>, vector<16x64xi32>
    %cst_36 = arith.constant dense<2147483647> : vector<64xi32>
    %116 = vector.multi_reduction <minsi>, %115, %cst_36 [0] : vector<16x64xi32> to vector<64xi32>
    %117 = vector.shape_cast %116 : vector<64xi32> to vector<1x64xi32>
    %118 = vector.broadcast %117 : vector<1x64xi32> to vector<16x64xi32>
    %119 = arith.cmpi eq, %91, %118 : vector<16x64xi32>
    %cst_37 = arith.constant 1.000000e+30 : f32
    %120 = vector.broadcast %cst_37 : f32 to vector<16x64xf32>
    %121 = arith.select %119, %120, %108 : vector<16x64xi1>, vector<16x64xf32>
    %cst_38 = arith.constant dense<0x7F800000> : vector<64xf32>
    %122 = vector.multi_reduction <minimumf>, %121, %cst_38 [0] : vector<16x64xf32> to vector<64xf32>
    %123 = vector.shape_cast %122 : vector<64xf32> to vector<1x64xf32>
    %124 = arith.subf %111, %123 : vector<1x64xf32>
    %125 = vector.broadcast %123 : vector<1x64xf32> to vector<16x64xf32>
    %126 = arith.cmpf oeq, %121, %125 : vector<16x64xf32>
    %c16_i32_39 = arith.constant 16 : i32
    %127 = vector.broadcast %c16_i32_39 : i32 to vector<16x64xi32>
    %128 = arith.select %126, %91, %127 : vector<16x64xi1>, vector<16x64xi32>
    %cst_40 = arith.constant dense<2147483647> : vector<64xi32>
    %129 = vector.multi_reduction <minsi>, %128, %cst_40 [0] : vector<16x64xi32> to vector<64xi32>
    %130 = vector.shape_cast %129 : vector<64xi32> to vector<1x64xi32>
    %131 = vector.broadcast %130 : vector<1x64xi32> to vector<16x64xi32>
    %132 = arith.cmpi eq, %91, %131 : vector<16x64xi32>
    %cst_41 = arith.constant 1.000000e+30 : f32
    %133 = vector.broadcast %cst_41 : f32 to vector<16x64xf32>
    %134 = arith.select %132, %133, %121 : vector<16x64xi1>, vector<16x64xf32>
    %cst_42 = arith.constant dense<0x7F800000> : vector<64xf32>
    %135 = vector.multi_reduction <minimumf>, %134, %cst_42 [0] : vector<16x64xf32> to vector<64xf32>
    %136 = vector.shape_cast %135 : vector<64xf32> to vector<1x64xf32>
    %137 = arith.subf %124, %136 : vector<1x64xf32>
    %138 = vector.broadcast %136 : vector<1x64xf32> to vector<16x64xf32>
    %139 = arith.cmpf oeq, %134, %138 : vector<16x64xf32>
    %c16_i32_43 = arith.constant 16 : i32
    %140 = vector.broadcast %c16_i32_43 : i32 to vector<16x64xi32>
    %141 = arith.select %139, %91, %140 : vector<16x64xi1>, vector<16x64xi32>
    %cst_44 = arith.constant dense<2147483647> : vector<64xi32>
    %142 = vector.multi_reduction <minsi>, %141, %cst_44 [0] : vector<16x64xi32> to vector<64xi32>
    %143 = vector.shape_cast %142 : vector<64xi32> to vector<1x64xi32>
    %144 = vector.broadcast %143 : vector<1x64xi32> to vector<16x64xi32>
    %145 = arith.cmpi eq, %91, %144 : vector<16x64xi32>
    %cst_45 = arith.constant 1.000000e+30 : f32
    %146 = vector.broadcast %cst_45 : f32 to vector<16x64xf32>
    %147 = arith.select %145, %146, %134 : vector<16x64xi1>, vector<16x64xf32>
    %cst_46 = arith.constant dense<0x7F800000> : vector<64xf32>
    %148 = vector.multi_reduction <minimumf>, %147, %cst_46 [0] : vector<16x64xf32> to vector<64xf32>
    %149 = vector.shape_cast %148 : vector<64xf32> to vector<1x64xf32>
    %150 = arith.subf %137, %149 : vector<1x64xf32>
    %151 = vector.broadcast %149 : vector<1x64xf32> to vector<16x64xf32>
    %152 = arith.cmpf oeq, %147, %151 : vector<16x64xf32>
    %c16_i32_47 = arith.constant 16 : i32
    %153 = vector.broadcast %c16_i32_47 : i32 to vector<16x64xi32>
    %154 = arith.select %152, %91, %153 : vector<16x64xi1>, vector<16x64xi32>
    %cst_48 = arith.constant dense<2147483647> : vector<64xi32>
    %155 = vector.multi_reduction <minsi>, %154, %cst_48 [0] : vector<16x64xi32> to vector<64xi32>
    %156 = vector.shape_cast %155 : vector<64xi32> to vector<1x64xi32>
    %157 = vector.broadcast %156 : vector<1x64xi32> to vector<16x64xi32>
    %158 = arith.cmpi eq, %91, %157 : vector<16x64xi32>
    %cst_49 = arith.constant 1.000000e+30 : f32
    %159 = vector.broadcast %cst_49 : f32 to vector<16x64xf32>
    %160 = arith.select %158, %159, %147 : vector<16x64xi1>, vector<16x64xf32>
    %cst_50 = arith.constant dense<0x7F800000> : vector<64xf32>
    %161 = vector.multi_reduction <minimumf>, %160, %cst_50 [0] : vector<16x64xf32> to vector<64xf32>
    %162 = vector.shape_cast %161 : vector<64xf32> to vector<1x64xf32>
    %163 = arith.subf %150, %162 : vector<1x64xf32>
    %cst_51 = arith.constant 1.000000e-01 : f32
    %164 = vector.broadcast %cst_51 : f32 to vector<1x64xf32>
    %165 = arith.mulf %163, %164 : vector<1x64xf32>
    %c0_52 = arith.constant 0 : index
    %c0_53 = arith.constant 0 : index
    %c0_54 = arith.constant 0 : index
    %c0_55 = arith.constant 0 : index
    %166 = vector.load %arg5[%c0_52, %c0_53, %c0_54, %c0_55] : memref<1x4x1x64xf32, #tpu.memory_space<vmem>>, vector<1x1x1x64xf32>
    %167 = vector.shape_cast %166 : vector<1x1x1x64xf32> to vector<1x64xf32>
    %168 = vector.shape_cast %165 : vector<1x64xf32> to vector<1x1x1x64xf32>
    tpu.vector_store %arg5[%c0_52, %c0_53, %c0_54, %c0_55], %168 {strides = array<i32>} : memref<1x4x1x64xf32, #tpu.memory_space<vmem>>, vector<1x1x1x64xf32>,
    %169 = vector.broadcast %90 : vector<16x1xf32> to vector<16x64xf32>
    %170 = arith.mulf %78, %169 : vector<16x64xf32>
    %cst_56 = arith.constant dense<0.000000e+00> : vector<64xf32>
    %171 = vector.multi_reduction <add>, %170, %cst_56 [0] : vector<16x64xf32> to vector<64xf32>
    %172 = vector.shape_cast %171 : vector<64xf32> to vector<1x64xf32>
    %cst_57 = arith.constant dense<0x7F800000> : vector<64xf32>
    %173 = vector.multi_reduction <minimumf>, %170, %cst_57 [0] : vector<16x64xf32> to vector<64xf32>
    %174 = vector.shape_cast %173 : vector<64xf32> to vector<1x64xf32>
    %175 = arith.subf %172, %174 : vector<1x64xf32>
    %176 = vector.broadcast %174 : vector<1x64xf32> to vector<16x64xf32>
    %177 = arith.cmpf oeq, %170, %176 : vector<16x64xf32>
    %c16_i32_58 = arith.constant 16 : i32
    %178 = vector.broadcast %c16_i32_58 : i32 to vector<16x64xi32>
    %179 = arith.select %177, %91, %178 : vector<16x64xi1>, vector<16x64xi32>
    %cst_59 = arith.constant dense<2147483647> : vector<64xi32>
    %180 = vector.multi_reduction <minsi>, %179, %cst_59 [0] : vector<16x64xi32> to vector<64xi32>
    %181 = vector.shape_cast %180 : vector<64xi32> to vector<1x64xi32>
    %182 = vector.broadcast %181 : vector<1x64xi32> to vector<16x64xi32>
    %183 = arith.cmpi eq, %91, %182 : vector<16x64xi32>
    %cst_60 = arith.constant 1.000000e+30 : f32
    %184 = vector.broadcast %cst_60 : f32 to vector<16x64xf32>
    %185 = arith.select %183, %184, %170 : vector<16x64xi1>, vector<16x64xf32>
    %cst_61 = arith.constant dense<0x7F800000> : vector<64xf32>
    %186 = vector.multi_reduction <minimumf>, %185, %cst_61 [0] : vector<16x64xf32> to vector<64xf32>
    %187 = vector.shape_cast %186 : vector<64xf32> to vector<1x64xf32>
    %188 = arith.subf %175, %187 : vector<1x64xf32>
    %189 = vector.broadcast %187 : vector<1x64xf32> to vector<16x64xf32>
    %190 = arith.cmpf oeq, %185, %189 : vector<16x64xf32>
    %c16_i32_62 = arith.constant 16 : i32
    %191 = vector.broadcast %c16_i32_62 : i32 to vector<16x64xi32>
    %192 = arith.select %190, %91, %191 : vector<16x64xi1>, vector<16x64xi32>
    %cst_63 = arith.constant dense<2147483647> : vector<64xi32>
    %193 = vector.multi_reduction <minsi>, %192, %cst_63 [0] : vector<16x64xi32> to vector<64xi32>
    %194 = vector.shape_cast %193 : vector<64xi32> to vector<1x64xi32>
    %195 = vector.broadcast %194 : vector<1x64xi32> to vector<16x64xi32>
    %196 = arith.cmpi eq, %91, %195 : vector<16x64xi32>
    %cst_64 = arith.constant 1.000000e+30 : f32
    %197 = vector.broadcast %cst_64 : f32 to vector<16x64xf32>
    %198 = arith.select %196, %197, %185 : vector<16x64xi1>, vector<16x64xf32>
    %cst_65 = arith.constant dense<0x7F800000> : vector<64xf32>
    %199 = vector.multi_reduction <minimumf>, %198, %cst_65 [0] : vector<16x64xf32> to vector<64xf32>
    %200 = vector.shape_cast %199 : vector<64xf32> to vector<1x64xf32>
    %201 = arith.subf %188, %200 : vector<1x64xf32>
    %202 = vector.broadcast %200 : vector<1x64xf32> to vector<16x64xf32>
    %203 = arith.cmpf oeq, %198, %202 : vector<16x64xf32>
    %c16_i32_66 = arith.constant 16 : i32
    %204 = vector.broadcast %c16_i32_66 : i32 to vector<16x64xi32>
    %205 = arith.select %203, %91, %204 : vector<16x64xi1>, vector<16x64xi32>
    %cst_67 = arith.constant dense<2147483647> : vector<64xi32>
    %206 = vector.multi_reduction <minsi>, %205, %cst_67 [0] : vector<16x64xi32> to vector<64xi32>
    %207 = vector.shape_cast %206 : vector<64xi32> to vector<1x64xi32>
    %208 = vector.broadcast %207 : vector<1x64xi32> to vector<16x64xi32>
    %209 = arith.cmpi eq, %91, %208 : vector<16x64xi32>
    %cst_68 = arith.constant 1.000000e+30 : f32
    %210 = vector.broadcast %cst_68 : f32 to vector<16x64xf32>
    %211 = arith.select %209, %210, %198 : vector<16x64xi1>, vector<16x64xf32>
    %cst_69 = arith.constant dense<0x7F800000> : vector<64xf32>
    %212 = vector.multi_reduction <minimumf>, %211, %cst_69 [0] : vector<16x64xf32> to vector<64xf32>
    %213 = vector.shape_cast %212 : vector<64xf32> to vector<1x64xf32>
    %214 = arith.subf %201, %213 : vector<1x64xf32>
    %215 = vector.broadcast %213 : vector<1x64xf32> to vector<16x64xf32>
    %216 = arith.cmpf oeq, %211, %215 : vector<16x64xf32>
    %c16_i32_70 = arith.constant 16 : i32
    %217 = vector.broadcast %c16_i32_70 : i32 to vector<16x64xi32>
    %218 = arith.select %216, %91, %217 : vector<16x64xi1>, vector<16x64xi32>
    %cst_71 = arith.constant dense<2147483647> : vector<64xi32>
    %219 = vector.multi_reduction <minsi>, %218, %cst_71 [0] : vector<16x64xi32> to vector<64xi32>
    %220 = vector.shape_cast %219 : vector<64xi32> to vector<1x64xi32>
    %221 = vector.broadcast %220 : vector<1x64xi32> to vector<16x64xi32>
    %222 = arith.cmpi eq, %91, %221 : vector<16x64xi32>
    %cst_72 = arith.constant 1.000000e+30 : f32
    %223 = vector.broadcast %cst_72 : f32 to vector<16x64xf32>
    %224 = arith.select %222, %223, %211 : vector<16x64xi1>, vector<16x64xf32>
    %cst_73 = arith.constant dense<0x7F800000> : vector<64xf32>
    %225 = vector.multi_reduction <minimumf>, %224, %cst_73 [0] : vector<16x64xf32> to vector<64xf32>
    %226 = vector.shape_cast %225 : vector<64xf32> to vector<1x64xf32>
    %227 = arith.subf %214, %226 : vector<1x64xf32>
    %228 = vector.broadcast %226 : vector<1x64xf32> to vector<16x64xf32>
    %229 = arith.cmpf oeq, %224, %228 : vector<16x64xf32>
    %c16_i32_74 = arith.constant 16 : i32
    %230 = vector.broadcast %c16_i32_74 : i32 to vector<16x64xi32>
    %231 = arith.select %229, %91, %230 : vector<16x64xi1>, vector<16x64xi32>
    %cst_75 = arith.constant dense<2147483647> : vector<64xi32>
    %232 = vector.multi_reduction <minsi>, %231, %cst_75 [0] : vector<16x64xi32> to vector<64xi32>
    %233 = vector.shape_cast %232 : vector<64xi32> to vector<1x64xi32>
    %234 = vector.broadcast %233 : vector<1x64xi32> to vector<16x64xi32>
    %235 = arith.cmpi eq, %91, %234 : vector<16x64xi32>
    %cst_76 = arith.constant 1.000000e+30 : f32
    %236 = vector.broadcast %cst_76 : f32 to vector<16x64xf32>
    %237 = arith.select %235, %236, %224 : vector<16x64xi1>, vector<16x64xf32>
    %cst_77 = arith.constant dense<0x7F800000> : vector<64xf32>
    %238 = vector.multi_reduction <minimumf>, %237, %cst_77 [0] : vector<16x64xf32> to vector<64xf32>
    %239 = vector.shape_cast %238 : vector<64xf32> to vector<1x64xf32>
    %240 = arith.subf %227, %239 : vector<1x64xf32>
    %cst_78 = arith.constant 1.000000e-01 : f32
    %241 = vector.broadcast %cst_78 : f32 to vector<1x64xf32>
    %242 = arith.mulf %240, %241 : vector<1x64xf32>
    %c0_79 = arith.constant 0 : index
    %c1_80 = arith.constant 1 : index
    %c0_81 = arith.constant 0 : index
    %c0_82 = arith.constant 0 : index
    %243 = vector.load %arg5[%c0_79, %c1_80, %c0_81, %c0_82] : memref<1x4x1x64xf32, #tpu.memory_space<vmem>>, vector<1x1x1x64xf32>
    %244 = vector.shape_cast %243 : vector<1x1x1x64xf32> to vector<1x64xf32>
    %245 = vector.shape_cast %242 : vector<1x64xf32> to vector<1x1x1x64xf32>
    tpu.vector_store %arg5[%c0_79, %c1_80, %c0_81, %c0_82], %245 {strides = array<i32>} : memref<1x4x1x64xf32, #tpu.memory_space<vmem>>, vector<1x1x1x64xf32>,
    %246 = vector.broadcast %90 : vector<16x1xf32> to vector<16x64xf32>
    %247 = arith.mulf %81, %246 : vector<16x64xf32>
    %cst_83 = arith.constant dense<0.000000e+00> : vector<64xf32>
    %248 = vector.multi_reduction <add>, %247, %cst_83 [0] : vector<16x64xf32> to vector<64xf32>
    %249 = vector.shape_cast %248 : vector<64xf32> to vector<1x64xf32>
    %cst_84 = arith.constant dense<0x7F800000> : vector<64xf32>
    %250 = vector.multi_reduction <minimumf>, %247, %cst_84 [0] : vector<16x64xf32> to vector<64xf32>
    %251 = vector.shape_cast %250 : vector<64xf32> to vector<1x64xf32>
    %252 = arith.subf %249, %251 : vector<1x64xf32>
    %253 = vector.broadcast %251 : vector<1x64xf32> to vector<16x64xf32>
    %254 = arith.cmpf oeq, %247, %253 : vector<16x64xf32>
    %c16_i32_85 = arith.constant 16 : i32
    %255 = vector.broadcast %c16_i32_85 : i32 to vector<16x64xi32>
    %256 = arith.select %254, %91, %255 : vector<16x64xi1>, vector<16x64xi32>
    %cst_86 = arith.constant dense<2147483647> : vector<64xi32>
    %257 = vector.multi_reduction <minsi>, %256, %cst_86 [0] : vector<16x64xi32> to vector<64xi32>
    %258 = vector.shape_cast %257 : vector<64xi32> to vector<1x64xi32>
    %259 = vector.broadcast %258 : vector<1x64xi32> to vector<16x64xi32>
    %260 = arith.cmpi eq, %91, %259 : vector<16x64xi32>
    %cst_87 = arith.constant 1.000000e+30 : f32
    %261 = vector.broadcast %cst_87 : f32 to vector<16x64xf32>
    %262 = arith.select %260, %261, %247 : vector<16x64xi1>, vector<16x64xf32>
    %cst_88 = arith.constant dense<0x7F800000> : vector<64xf32>
    %263 = vector.multi_reduction <minimumf>, %262, %cst_88 [0] : vector<16x64xf32> to vector<64xf32>
    %264 = vector.shape_cast %263 : vector<64xf32> to vector<1x64xf32>
    %265 = arith.subf %252, %264 : vector<1x64xf32>
    %266 = vector.broadcast %264 : vector<1x64xf32> to vector<16x64xf32>
    %267 = arith.cmpf oeq, %262, %266 : vector<16x64xf32>
    %c16_i32_89 = arith.constant 16 : i32
    %268 = vector.broadcast %c16_i32_89 : i32 to vector<16x64xi32>
    %269 = arith.select %267, %91, %268 : vector<16x64xi1>, vector<16x64xi32>
    %cst_90 = arith.constant dense<2147483647> : vector<64xi32>
    %270 = vector.multi_reduction <minsi>, %269, %cst_90 [0] : vector<16x64xi32> to vector<64xi32>
    %271 = vector.shape_cast %270 : vector<64xi32> to vector<1x64xi32>
    %272 = vector.broadcast %271 : vector<1x64xi32> to vector<16x64xi32>
    %273 = arith.cmpi eq, %91, %272 : vector<16x64xi32>
    %cst_91 = arith.constant 1.000000e+30 : f32
    %274 = vector.broadcast %cst_91 : f32 to vector<16x64xf32>
    %275 = arith.select %273, %274, %262 : vector<16x64xi1>, vector<16x64xf32>
    %cst_92 = arith.constant dense<0x7F800000> : vector<64xf32>
    %276 = vector.multi_reduction <minimumf>, %275, %cst_92 [0] : vector<16x64xf32> to vector<64xf32>
    %277 = vector.shape_cast %276 : vector<64xf32> to vector<1x64xf32>
    %278 = arith.subf %265, %277 : vector<1x64xf32>
    %279 = vector.broadcast %277 : vector<1x64xf32> to vector<16x64xf32>
    %280 = arith.cmpf oeq, %275, %279 : vector<16x64xf32>
    %c16_i32_93 = arith.constant 16 : i32
    %281 = vector.broadcast %c16_i32_93 : i32 to vector<16x64xi32>
    %282 = arith.select %280, %91, %281 : vector<16x64xi1>, vector<16x64xi32>
    %cst_94 = arith.constant dense<2147483647> : vector<64xi32>
    %283 = vector.multi_reduction <minsi>, %282, %cst_94 [0] : vector<16x64xi32> to vector<64xi32>
    %284 = vector.shape_cast %283 : vector<64xi32> to vector<1x64xi32>
    %285 = vector.broadcast %284 : vector<1x64xi32> to vector<16x64xi32>
    %286 = arith.cmpi eq, %91, %285 : vector<16x64xi32>
    %cst_95 = arith.constant 1.000000e+30 : f32
    %287 = vector.broadcast %cst_95 : f32 to vector<16x64xf32>
    %288 = arith.select %286, %287, %275 : vector<16x64xi1>, vector<16x64xf32>
    %cst_96 = arith.constant dense<0x7F800000> : vector<64xf32>
    %289 = vector.multi_reduction <minimumf>, %288, %cst_96 [0] : vector<16x64xf32> to vector<64xf32>
    %290 = vector.shape_cast %289 : vector<64xf32> to vector<1x64xf32>
    %291 = arith.subf %278, %290 : vector<1x64xf32>
    %292 = vector.broadcast %290 : vector<1x64xf32> to vector<16x64xf32>
    %293 = arith.cmpf oeq, %288, %292 : vector<16x64xf32>
    %c16_i32_97 = arith.constant 16 : i32
    %294 = vector.broadcast %c16_i32_97 : i32 to vector<16x64xi32>
    %295 = arith.select %293, %91, %294 : vector<16x64xi1>, vector<16x64xi32>
    %cst_98 = arith.constant dense<2147483647> : vector<64xi32>
    %296 = vector.multi_reduction <minsi>, %295, %cst_98 [0] : vector<16x64xi32> to vector<64xi32>
    %297 = vector.shape_cast %296 : vector<64xi32> to vector<1x64xi32>
    %298 = vector.broadcast %297 : vector<1x64xi32> to vector<16x64xi32>
    %299 = arith.cmpi eq, %91, %298 : vector<16x64xi32>
    %cst_99 = arith.constant 1.000000e+30 : f32
    %300 = vector.broadcast %cst_99 : f32 to vector<16x64xf32>
    %301 = arith.select %299, %300, %288 : vector<16x64xi1>, vector<16x64xf32>
    %cst_100 = arith.constant dense<0x7F800000> : vector<64xf32>
    %302 = vector.multi_reduction <minimumf>, %301, %cst_100 [0] : vector<16x64xf32> to vector<64xf32>
    %303 = vector.shape_cast %302 : vector<64xf32> to vector<1x64xf32>
    %304 = arith.subf %291, %303 : vector<1x64xf32>
    %305 = vector.broadcast %303 : vector<1x64xf32> to vector<16x64xf32>
    %306 = arith.cmpf oeq, %301, %305 : vector<16x64xf32>
    %c16_i32_101 = arith.constant 16 : i32
    %307 = vector.broadcast %c16_i32_101 : i32 to vector<16x64xi32>
    %308 = arith.select %306, %91, %307 : vector<16x64xi1>, vector<16x64xi32>
    %cst_102 = arith.constant dense<2147483647> : vector<64xi32>
    %309 = vector.multi_reduction <minsi>, %308, %cst_102 [0] : vector<16x64xi32> to vector<64xi32>
    %310 = vector.shape_cast %309 : vector<64xi32> to vector<1x64xi32>
    %311 = vector.broadcast %310 : vector<1x64xi32> to vector<16x64xi32>
    %312 = arith.cmpi eq, %91, %311 : vector<16x64xi32>
    %cst_103 = arith.constant 1.000000e+30 : f32
    %313 = vector.broadcast %cst_103 : f32 to vector<16x64xf32>
    %314 = arith.select %312, %313, %301 : vector<16x64xi1>, vector<16x64xf32>
    %cst_104 = arith.constant dense<0x7F800000> : vector<64xf32>
    %315 = vector.multi_reduction <minimumf>, %314, %cst_104 [0] : vector<16x64xf32> to vector<64xf32>
    %316 = vector.shape_cast %315 : vector<64xf32> to vector<1x64xf32>
    %317 = arith.subf %304, %316 : vector<1x64xf32>
    %cst_105 = arith.constant 1.000000e-01 : f32
    %318 = vector.broadcast %cst_105 : f32 to vector<1x64xf32>
    %319 = arith.mulf %317, %318 : vector<1x64xf32>
    %c0_106 = arith.constant 0 : index
    %c2_107 = arith.constant 2 : index
    %c0_108 = arith.constant 0 : index
    %c0_109 = arith.constant 0 : index
    %320 = vector.load %arg5[%c0_106, %c2_107, %c0_108, %c0_109] : memref<1x4x1x64xf32, #tpu.memory_space<vmem>>, vector<1x1x1x64xf32>
    %321 = vector.shape_cast %320 : vector<1x1x1x64xf32> to vector<1x64xf32>
    %322 = vector.shape_cast %319 : vector<1x64xf32> to vector<1x1x1x64xf32>
    tpu.vector_store %arg5[%c0_106, %c2_107, %c0_108, %c0_109], %322 {strides = array<i32>} : memref<1x4x1x64xf32, #tpu.memory_space<vmem>>, vector<1x1x1x64xf32>,
    %323 = vector.broadcast %90 : vector<16x1xf32> to vector<16x64xf32>
    %324 = arith.mulf %84, %323 : vector<16x64xf32>
    %cst_110 = arith.constant dense<0.000000e+00> : vector<64xf32>
    %325 = vector.multi_reduction <add>, %324, %cst_110 [0] : vector<16x64xf32> to vector<64xf32>
    %326 = vector.shape_cast %325 : vector<64xf32> to vector<1x64xf32>
    %cst_111 = arith.constant dense<0x7F800000> : vector<64xf32>
    %327 = vector.multi_reduction <minimumf>, %324, %cst_111 [0] : vector<16x64xf32> to vector<64xf32>
    %328 = vector.shape_cast %327 : vector<64xf32> to vector<1x64xf32>
    %329 = arith.subf %326, %328 : vector<1x64xf32>
    %330 = vector.broadcast %328 : vector<1x64xf32> to vector<16x64xf32>
    %331 = arith.cmpf oeq, %324, %330 : vector<16x64xf32>
    %c16_i32_112 = arith.constant 16 : i32
    %332 = vector.broadcast %c16_i32_112 : i32 to vector<16x64xi32>
    %333 = arith.select %331, %91, %332 : vector<16x64xi1>, vector<16x64xi32>
    %cst_113 = arith.constant dense<2147483647> : vector<64xi32>
    %334 = vector.multi_reduction <minsi>, %333, %cst_113 [0] : vector<16x64xi32> to vector<64xi32>
    %335 = vector.shape_cast %334 : vector<64xi32> to vector<1x64xi32>
    %336 = vector.broadcast %335 : vector<1x64xi32> to vector<16x64xi32>
    %337 = arith.cmpi eq, %91, %336 : vector<16x64xi32>
    %cst_114 = arith.constant 1.000000e+30 : f32
    %338 = vector.broadcast %cst_114 : f32 to vector<16x64xf32>
    %339 = arith.select %337, %338, %324 : vector<16x64xi1>, vector<16x64xf32>
    %cst_115 = arith.constant dense<0x7F800000> : vector<64xf32>
    %340 = vector.multi_reduction <minimumf>, %339, %cst_115 [0] : vector<16x64xf32> to vector<64xf32>
    %341 = vector.shape_cast %340 : vector<64xf32> to vector<1x64xf32>
    %342 = arith.subf %329, %341 : vector<1x64xf32>
    %343 = vector.broadcast %341 : vector<1x64xf32> to vector<16x64xf32>
    %344 = arith.cmpf oeq, %339, %343 : vector<16x64xf32>
    %c16_i32_116 = arith.constant 16 : i32
    %345 = vector.broadcast %c16_i32_116 : i32 to vector<16x64xi32>
    %346 = arith.select %344, %91, %345 : vector<16x64xi1>, vector<16x64xi32>
    %cst_117 = arith.constant dense<2147483647> : vector<64xi32>
    %347 = vector.multi_reduction <minsi>, %346, %cst_117 [0] : vector<16x64xi32> to vector<64xi32>
    %348 = vector.shape_cast %347 : vector<64xi32> to vector<1x64xi32>
    %349 = vector.broadcast %348 : vector<1x64xi32> to vector<16x64xi32>
    %350 = arith.cmpi eq, %91, %349 : vector<16x64xi32>
    %cst_118 = arith.constant 1.000000e+30 : f32
    %351 = vector.broadcast %cst_118 : f32 to vector<16x64xf32>
    %352 = arith.select %350, %351, %339 : vector<16x64xi1>, vector<16x64xf32>
    %cst_119 = arith.constant dense<0x7F800000> : vector<64xf32>
    %353 = vector.multi_reduction <minimumf>, %352, %cst_119 [0] : vector<16x64xf32> to vector<64xf32>
    %354 = vector.shape_cast %353 : vector<64xf32> to vector<1x64xf32>
    %355 = arith.subf %342, %354 : vector<1x64xf32>
    %356 = vector.broadcast %354 : vector<1x64xf32> to vector<16x64xf32>
    %357 = arith.cmpf oeq, %352, %356 : vector<16x64xf32>
    %c16_i32_120 = arith.constant 16 : i32
    %358 = vector.broadcast %c16_i32_120 : i32 to vector<16x64xi32>
    %359 = arith.select %357, %91, %358 : vector<16x64xi1>, vector<16x64xi32>
    %cst_121 = arith.constant dense<2147483647> : vector<64xi32>
    %360 = vector.multi_reduction <minsi>, %359, %cst_121 [0] : vector<16x64xi32> to vector<64xi32>
    %361 = vector.shape_cast %360 : vector<64xi32> to vector<1x64xi32>
    %362 = vector.broadcast %361 : vector<1x64xi32> to vector<16x64xi32>
    %363 = arith.cmpi eq, %91, %362 : vector<16x64xi32>
    %cst_122 = arith.constant 1.000000e+30 : f32
    %364 = vector.broadcast %cst_122 : f32 to vector<16x64xf32>
    %365 = arith.select %363, %364, %352 : vector<16x64xi1>, vector<16x64xf32>
    %cst_123 = arith.constant dense<0x7F800000> : vector<64xf32>
    %366 = vector.multi_reduction <minimumf>, %365, %cst_123 [0] : vector<16x64xf32> to vector<64xf32>
    %367 = vector.shape_cast %366 : vector<64xf32> to vector<1x64xf32>
    %368 = arith.subf %355, %367 : vector<1x64xf32>
    %369 = vector.broadcast %367 : vector<1x64xf32> to vector<16x64xf32>
    %370 = arith.cmpf oeq, %365, %369 : vector<16x64xf32>
    %c16_i32_124 = arith.constant 16 : i32
    %371 = vector.broadcast %c16_i32_124 : i32 to vector<16x64xi32>
    %372 = arith.select %370, %91, %371 : vector<16x64xi1>, vector<16x64xi32>
    %cst_125 = arith.constant dense<2147483647> : vector<64xi32>
    %373 = vector.multi_reduction <minsi>, %372, %cst_125 [0] : vector<16x64xi32> to vector<64xi32>
    %374 = vector.shape_cast %373 : vector<64xi32> to vector<1x64xi32>
    %375 = vector.broadcast %374 : vector<1x64xi32> to vector<16x64xi32>
    %376 = arith.cmpi eq, %91, %375 : vector<16x64xi32>
    %cst_126 = arith.constant 1.000000e+30 : f32
    %377 = vector.broadcast %cst_126 : f32 to vector<16x64xf32>
    %378 = arith.select %376, %377, %365 : vector<16x64xi1>, vector<16x64xf32>
    %cst_127 = arith.constant dense<0x7F800000> : vector<64xf32>
    %379 = vector.multi_reduction <minimumf>, %378, %cst_127 [0] : vector<16x64xf32> to vector<64xf32>
    %380 = vector.shape_cast %379 : vector<64xf32> to vector<1x64xf32>
    %381 = arith.subf %368, %380 : vector<1x64xf32>
    %382 = vector.broadcast %380 : vector<1x64xf32> to vector<16x64xf32>
    %383 = arith.cmpf oeq, %378, %382 : vector<16x64xf32>
    %c16_i32_128 = arith.constant 16 : i32
    %384 = vector.broadcast %c16_i32_128 : i32 to vector<16x64xi32>
    %385 = arith.select %383, %91, %384 : vector<16x64xi1>, vector<16x64xi32>
    %cst_129 = arith.constant dense<2147483647> : vector<64xi32>
    %386 = vector.multi_reduction <minsi>, %385, %cst_129 [0] : vector<16x64xi32> to vector<64xi32>
    %387 = vector.shape_cast %386 : vector<64xi32> to vector<1x64xi32>
    %388 = vector.broadcast %387 : vector<1x64xi32> to vector<16x64xi32>
    %389 = arith.cmpi eq, %91, %388 : vector<16x64xi32>
    %cst_130 = arith.constant 1.000000e+30 : f32
    %390 = vector.broadcast %cst_130 : f32 to vector<16x64xf32>
    %391 = arith.select %389, %390, %378 : vector<16x64xi1>, vector<16x64xf32>
    %cst_131 = arith.constant dense<0x7F800000> : vector<64xf32>
    %392 = vector.multi_reduction <minimumf>, %391, %cst_131 [0] : vector<16x64xf32> to vector<64xf32>
    %393 = vector.shape_cast %392 : vector<64xf32> to vector<1x64xf32>
    %394 = arith.subf %381, %393 : vector<1x64xf32>
    %cst_132 = arith.constant 1.000000e-01 : f32
    %395 = vector.broadcast %cst_132 : f32 to vector<1x64xf32>
    %396 = arith.mulf %394, %395 : vector<1x64xf32>
    %c0_133 = arith.constant 0 : index
    %c3_134 = arith.constant 3 : index
    %c0_135 = arith.constant 0 : index
    %c0_136 = arith.constant 0 : index
    %397 = vector.load %arg5[%c0_133, %c3_134, %c0_135, %c0_136] : memref<1x4x1x64xf32, #tpu.memory_space<vmem>>, vector<1x1x1x64xf32>
    %398 = vector.shape_cast %397 : vector<1x1x1x64xf32> to vector<1x64xf32>
    %399 = vector.shape_cast %396 : vector<1x64xf32> to vector<1x1x1x64xf32>
    tpu.vector_store %arg5[%c0_133, %c3_134, %c0_135, %c0_136], %399 {strides = array<i32>} : memref<1x4x1x64xf32, #tpu.memory_space<vmem>>, vector<1x1x1x64xf32>,
    return
  }
  func.func @transform_0(%arg0: i32) -> (i32, i32, i32) {
    %c0_i32 = arith.constant 0 : i32
    %c0_i32_0 = arith.constant 0 : i32
    %c0_i32_1 = arith.constant 0 : i32
    return %arg0, %c0_i32, %c0_i32_0 : i32, i32, i32
  }
  func.func @transform_1(%arg0: i32) -> (i32, i32) {
    %c0_i32 = arith.constant 0 : i32
    %c0_i32_0 = arith.constant 0 : i32
    %c0_i32_1 = arith.constant 0 : i32
    return %c0_i32, %c0_i32_0 : i32, i32
  }
  func.func @transform_2(%arg0: i32) -> (i32, i32) {
    %c0_i32 = arith.constant 0 : i32
    %c0_i32_0 = arith.constant 0 : i32
    %c0_i32_1 = arith.constant 0 : i32
    return %c0_i32, %c0_i32_0 : i32, i32
  }
  func.func @transform_3(%arg0: i32) -> (i32, i32, i32, i32) {
    %c0_i32 = arith.constant 0 : i32
    %c0_i32_0 = arith.constant 0 : i32
    %c0_i32_1 = arith.constant 0 : i32
    %c0_i32_2 = arith.constant 0 : i32
    return %arg0, %c0_i32, %c0_i32_0, %c0_i32_1 : i32, i32, i32, i32
  }
  func.func @transform_4(%arg0: i32) -> (i32, i32, i32, i32) {
    %c0_i32 = arith.constant 0 : i32
    %c0_i32_0 = arith.constant 0 : i32
    %c0_i32_1 = arith.constant 0 : i32
    %c0_i32_2 = arith.constant 0 : i32
    return %arg0, %c0_i32, %c0_i32_0, %c0_i32_1 : i32, i32, i32, i32
  }
}

</mosaic_0001>

<llo_original>
// kernel: tpu_custom_call.1
$region0: #{tpu_custom_call.1}
  #allocation0 [shape = 'u32[]', space=smem, size = 0x4, offset = 0x4, fixed_abs, tag = 'smem constant byte address 0x4 - core index']
  #allocation1 [shape = 'u32[144,128]{1,0:T(1,128)}', space=vmem, size = 0x12000, scoped, tag = 'internal scratch']
  %s0 = inlined_call_operand.vmem [shape: f32[2,16,64], index: 0, kind: input, shape index: {}]
  %s1 = inlined_call_operand.vmem [shape: f32[64,16], index: 1, kind: input, shape index: {}]
  %s2 = inlined_call_operand.vmem [shape: f32[64,1], index: 2, kind: input, shape index: {}]
  %s3 = inlined_call_operand.hbm [shape: f32[2,4,16,64], index: 3, kind: output, shape index: {0}]
  %s4 = inlined_call_operand.hbm [shape: f32[2,4,1,64], index: 4, kind: output, shape index: {1}]
  %5 = xla_tuple %s3, %s4
  %s6 = sld [smem:[#allocation0]]
  $region53: #{tpu_custom_call.1} parent=0
    _
  %s8 = ssub.s32 1, %s6
  %s9 = scalar_select 0, %s8, %s6
  $region1: #{tpu_custom_call.1} parent=0
    #allocation2 [shape = 'u8[65536]{0}', space=vmem, size = 0x10000, scoped, tag = 'output window, operand 0']
    #allocation3 [shape = 's32[2]{0}', space=sflag, size = 0x8, scoped, tag = 'scoped memory for tpu_custom_call.1']
    #allocation4 [shape = 'u8[4096]{0}', space=vmem, size = 0x1000, scoped, tag = 'output window, operand 1']
    #allocation5 [shape = 's32[2]{0}', space=sflag, size = 0x8, scoped, tag = 'scoped memory for tpu_custom_call.1']
    %10 = vsyncpa [#allocation3], 0
    %s11 = scalar_lea.sflag [#allocation3], 1
    %12 = vsyncpa %s11, 0
    %13 = vsyncpa [#allocation5], 0
    %s14 = scalar_lea.sflag [#allocation5], 1
    %15 = vsyncpa %s14, 0
    loop: start=0, step=1, limit=4
    $region2: #{tpu_custom_call.1} parent=1 // loop_pre_header
      _
    $region3: #{tpu_custom_call.1} parent=1 // loop_header
      %s17 = sphi 0, %s21
      %p18 = scmp.ge.s32.totalorder %s17, 4
      %s27 = sphi 0, %s29
      %s30 = sphi 0, %s27
      %s31 = sphi 0, %s30
      %s47 = sphi 0, %s31
      %s51 = sphi 0, %s51
      %s53 = sphi 0, %s51
      %s54 = sphi 0, %s53
      %s68 = sphi 0, %s54
      %s72 = sphi 0, %s72
      %s74 = sphi 0, %s72
      %s75 = sphi 0, %s74
      %s89 = sphi 0, %s75
      %s95 = sphi 0, %s97
      %s98 = sphi 0, %s95
      %s99 = sphi 0, %s98
      %s115 = sphi 0, %s99
      %s121 = sphi 0, %s123
      %s124 = sphi 0, %s121
      %s125 = sphi 0, %s124
      %s141 = sphi 0, %s125
    $region4: #{tpu_custom_call.1} parent=1 // loop_header_branch
      %20 = sbr.rel (%p18) target = $region8
    $region5: #{tpu_custom_call.1} parent=1 // loop_body
      %s22 = ssub.s32 %s17, 1
      %s23 = ssub.s32 %s17, 2
      %s24 = sadd.s32 %s17, 1
      %s25 = ssub.s32 %s17, %s24
      %p26 = scmp.eq.s32.totalorder %s25, 0
      %s28 = sadd.s32 %s27, 1
      %s29 = scalar_select %p26, %s27, %s28
      %p32 = pneg %p26
      %p33 = scmp.eq.s32.totalorder %s17, 1
      %p34 = por %p32, %p33
      %p35 = scmp.ne.s32.totalorder %s27, %s30
      %p36 = scmp.eq.s32.totalorder %s17, 0
      %p37 = por %p35, %p36
      %p38 = scmp.ne.s32.totalorder %s27, %s30
      %p39 = scmp.eq.s32.totalorder %s22, 1
      %p40 = por %p38, %p39
      %p41 = scmp.ne.s32.totalorder %s30, %s31
      %p42 = scmp.eq.s32.totalorder %s22, 0
      %p43 = por %p41, %p42
      %p44 = scmp.ne.s32.totalorder %s30, %s31
      %p45 = scmp.eq.s32.totalorder %s23, 1
      %p46 = por %p44, %p45
      %p48 = scmp.ne.s32.totalorder %s31, %s47
      %p49 = scmp.eq.s32.totalorder %s23, 0
      %p50 = por %p48, %p49
      %s52 = sadd.s32 %s51, 1
      %p55 = scmp.eq.s32.totalorder %s17, 1
      %p56 = scmp.ne.s32.totalorder %s51, %s53
      %p57 = scmp.eq.s32.totalorder %s17, 0
      %p58 = por %p56, %p57
      %p59 = scmp.ne.s32.totalorder %s51, %s53
      %p60 = scmp.eq.s32.totalorder %s22, 1
      %p61 = por %p59, %p60
      %p62 = scmp.ne.s32.totalorder %s53, %s54
      %p63 = scmp.eq.s32.totalorder %s22, 0
      %p64 = por %p62, %p63
      %p65 = scmp.ne.s32.totalorder %s53, %s54
      %p66 = scmp.eq.s32.totalorder %s23, 1
      %p67 = por %p65, %p66
      %p69 = scmp.ne.s32.totalorder %s54, %s68
      %p70 = scmp.eq.s32.totalorder %s23, 0
      %p71 = por %p69, %p70
      %s73 = sadd.s32 %s72, 1
      %p76 = scmp.eq.s32.totalorder %s17, 1
      %p77 = scmp.ne.s32.totalorder %s72, %s74
      %p78 = scmp.eq.s32.totalorder %s17, 0
      %p79 = por %p77, %p78
      %p80 = scmp.ne.s32.totalorder %s72, %s74
      %p81 = scmp.eq.s32.totalorder %s22, 1
      %p82 = por %p80, %p81
      %p83 = scmp.ne.s32.totalorder %s74, %s75
      %p84 = scmp.eq.s32.totalorder %s22, 0
      %p85 = por %p83, %p84
      %p86 = scmp.ne.s32.totalorder %s74, %s75
      %p87 = scmp.eq.s32.totalorder %s23, 1
      %p88 = por %p86, %p87
      %p90 = scmp.ne.s32.totalorder %s75, %s89
      %p91 = scmp.eq.s32.totalorder %s23, 0
      %p92 = por %p90, %p91
      %s93 = ssub.s32 %s17, %s24
      %p94 = scmp.eq.s32.totalorder %s93, 0
      %s96 = sadd.s32 %s95, 1
      %s97 = scalar_select %p94, %s95, %s96
      %p100 = pneg %p94
      %p101 = scmp.eq.s32.totalorder %s17, 1
      %p102 = por %p100, %p101
      %p103 = scmp.ne.s32.totalorder %s95, %s98
      %p104 = scmp.eq.s32.totalorder %s17, 0
      %p105 = por %p103, %p104
      %p106 = scmp.ne.s32.totalorder %s95, %s98
      %p107 = scmp.eq.s32.totalorder %s22, 1
      %p108 = por %p106, %p107
      %p109 = scmp.ne.s32.totalorder %s98, %s99
      %p110 = scmp.eq.s32.totalorder %s22, 0
      %p111 = por %p109, %p110
      %p112 = scmp.ne.s32.totalorder %s98, %s99
      %p113 = scmp.eq.s32.totalorder %s23, 1
      %p114 = por %p112, %p113
      %p116 = scmp.ne.s32.totalorder %s99, %s115
      %p117 = scmp.eq.s32.totalorder %s23, 0
      %p118 = por %p116, %p117
      %s119 = ssub.s32 %s17, %s24
      %p120 = scmp.eq.s32.totalorder %s119, 0
      %s122 = sadd.s32 %s121, 1
      %s123 = scalar_select %p120, %s121, %s122
      %p126 = pneg %p120
      %p127 = scmp.eq.s32.totalorder %s17, 1
      %p128 = por %p126, %p127
      %p129 = scmp.ne.s32.totalorder %s121, %s124
      %p130 = scmp.eq.s32.totalorder %s17, 0
      %p131 = por %p129, %p130
      %p132 = scmp.ne.s32.totalorder %s121, %s124
      %p133 = scmp.eq.s32.totalorder %s22, 1
      %p134 = por %p132, %p133
      %p135 = scmp.ne.s32.totalorder %s124, %s125
      %p136 = scmp.eq.s32.totalorder %s22, 0
      %p137 = por %p135, %p136
      %p138 = scmp.ne.s32.totalorder %s124, %s125
      %p139 = scmp.eq.s32.totalorder %s23, 1
      %p140 = por %p138, %p139
      %p142 = scmp.ne.s32.totalorder %s125, %s141
      %p143 = scmp.eq.s32.totalorder %s23, 0
      %p144 = por %p142, %p143
      %p145 = scmp.le.s32.totalorder 1, %s17
      %p146 = scmp.lt.s32.totalorder %s17, 3
      %p147 = pnand %p145, %p146
      %p148 = pneg %p147
      // Predicated region
      $region9: #{tpu_custom_call.1} parent=5 // pred_check
        _
      $region10: #{tpu_custom_call.1} parent=5 // pred_check_branch
        %150 = sbr.rel (%p147) target = $region12
      $region11: #{tpu_custom_call.1} parent=5 // pred_region
        %s151 = ssub.s32 %s17, 1
        // Predicated region
        $region13: #{tpu_custom_call.1} parent=11 // pred_check
          %p152 = pneg %p64
        $region14: #{tpu_custom_call.1} parent=11 // pred_check_branch
          %154 = sbr.rel (%p152) target = $region16
        $region15: #{tpu_custom_call.1} parent=11 // pred_region
          _
        $region16: #{tpu_custom_call.1} parent=11 // pred_fallthru
          _
        // Predicated region
        $region17: #{tpu_custom_call.1} parent=11 // pred_check
          %p155 = pneg %p85
        $region18: #{tpu_custom_call.1} parent=11 // pred_check_branch
          %157 = sbr.rel (%p155) target = $region20
        $region19: #{tpu_custom_call.1} parent=11 // pred_region
          _
        $region20: #{tpu_custom_call.1} parent=11 // pred_fallthru
          _
      $region12: #{tpu_custom_call.1} parent=5 // pred_fallthru
        _
      %p158 = scmp.lt.s32.totalorder %s17, 2
      // Predicated region
      $region21: #{tpu_custom_call.1} parent=5 // pred_check
        %p159 = pneg %p158
      $region22: #{tpu_custom_call.1} parent=5 // pred_check_branch
        %161 = sbr.rel (%p159) target = $region24
      $region23: #{tpu_custom_call.1} parent=5 // pred_region
        // Predicated region
        $region25: #{tpu_custom_call.1} parent=23 // pred_check
          %p162 = pneg %p37
        $region26: #{tpu_custom_call.1} parent=23 // pred_check_branch
          %164 = sbr.rel (%p162) target = $region28
        $region27: #{tpu_custom_call.1} parent=23 // pred_region
          %p165 = scmp.lt.s32.totalorder %s17, 1
          %s166 = scalar_select %p165, %s17, 1
          %s167 = smul.addr %s166, 2
          %s168 = smul.addr %s167, 8
          %s169 = scalar_lea.vmem %s0, %s168
        $region28: #{tpu_custom_call.1} parent=23 // pred_fallthru
          _
      $region24: #{tpu_custom_call.1} parent=5 // pred_fallthru
        _
      %p170 = scmp.le.s32.totalorder 1, %s17
      %p171 = scmp.lt.s32.totalorder %s17, 3
      %p172 = pnand %p170, %p171
      %p173 = pneg %p172
      // Predicated region
      $region29: #{tpu_custom_call.1} parent=5 // pred_check
        _
      $region30: #{tpu_custom_call.1} parent=5 // pred_check_branch
        %175 = sbr.rel (%p172) target = $region32
      $region31: #{tpu_custom_call.1} parent=5 // pred_region
        %s176 = ssub.s32 %s17, 1
        %p177 = scmp.lt.s32.totalorder %s22, 1
        %s178 = scalar_select %p177, %s22, 1
        %s179 = smul.addr %s178, 2
        %s180 = smul.addr %s179, 8
        %s181 = scalar_lea.vmem %s0, %s180
        %p182 = pneg %p43
        %p183 = pneg %p40
        %p184 = pneg %p64
        %p185 = pneg %p61
        %p186 = pneg %p85
        %p187 = pneg %p82
        %p188 = pneg %p111
        %p189 = pneg %p108
        %s190 = sand.u32 %s98, 1
        %s191 = scalar_lea.sflag [#allocation3], %s190
        %s192 = sand.u32 %s98, 1
        %s193 = smul.addr %s192, 64
        %s194 = scalar_lea.vmem [#allocation2], %s193
        %p195 = pneg %p137
        %p196 = pneg %p134
        %s197 = sand.u32 %s124, 1
        %s198 = scalar_lea.sflag [#allocation5], %s197
        %s199 = sand.u32 %s124, 1
        %s200 = smul.addr %s199, 4
        %s201 = scalar_lea.vmem [#allocation4], %s200
        %p202 = scmp.lt.s32.totalorder %s22, 1
        %s203 = scalar_select %p202, %s22, 1
        %s204 = smul.addr %s203, 2
        %s205 = smul.addr %s204, 8
        %s206 = scalar_lea.vmem %s0, %s205
        %v207 = vld [vmem:[%s206] sm:$0xff]
        %v208 = vld [vmem:[%s206 + $0x8] sm:$0xff]
        %v209 = vld [vmem:[%s1] sm:$0xff]
        %v210 = vld [vmem:[%s1 + $0x8] sm:$0xff]
        %v211 = vld [vmem:[%s1 + $0x10] sm:$0xff]
        %v212 = vld [vmem:[%s1 + $0x18] sm:$0xff]
        %v213 = vld [vmem:[%s1 + $0x20] sm:$0xff]
        %v214 = vld [vmem:[%s1 + $0x28] sm:$0xff]
        %v215 = vld [vmem:[%s1 + $0x30] sm:$0xff]
        %v216 = vld [vmem:[%s1 + $0x38] sm:$0xff]
        %v217 = vld [vmem:[%s2] sm:$0xff]
        %v218 = vld [vmem:[%s2 + $0x8] sm:$0xff]
        %v219 = vld [vmem:[%s2 + $0x10] sm:$0xff]
        %v220 = vld [vmem:[%s2 + $0x18] sm:$0xff]
        %v221 = vld [vmem:[%s2 + $0x20] sm:$0xff]
        %v222 = vld [vmem:[%s2 + $0x28] sm:$0xff]
        %v223 = vld [vmem:[%s2 + $0x30] sm:$0xff]
        %v224 = vld [vmem:[%s2 + $0x38] sm:$0xff]
        %226 = vset.pattern.permute.xlu0 0
        %227 = vperm.xlu0 %226, %v217
        %v228 = vpop.permute.xlu0 %227
        %231 = vset.pattern.permute.xlu0 0
        %232 = vperm.xlu0 %231, %v218
        %v233 = vpop.permute.xlu0 %232
        %236 = vset.pattern.permute.xlu0 0
        %237 = vperm.xlu0 %236, %v219
        %v238 = vpop.permute.xlu0 %237
        %241 = vset.pattern.permute.xlu0 0
        %242 = vperm.xlu0 %241, %v220
        %v243 = vpop.permute.xlu0 %242
        %246 = vset.pattern.permute.xlu0 0
        %247 = vperm.xlu0 %246, %v221
        %v248 = vpop.permute.xlu0 %247
        %251 = vset.pattern.permute.xlu0 0
        %252 = vperm.xlu0 %251, %v222
        %v253 = vpop.permute.xlu0 %252
        %256 = vset.pattern.permute.xlu0 0
        %257 = vperm.xlu0 %256, %v223
        %v258 = vpop.permute.xlu0 %257
        %261 = vset.pattern.permute.xlu0 0
        %262 = vperm.xlu0 %261, %v224
        %v263 = vpop.permute.xlu0 %262
        %vm265 = vcmask 130048
        %v267 = vsel %vm265, %v209, 0
        %v270 = vsel %vm265, %v210, 0
        %v273 = vsel %vm265, %v211, 0
        %v276 = vsel %vm265, %v212, 0
        %v279 = vsel %vm265, %v213, 0
        %v282 = vsel %vm265, %v214, 0
        %v285 = vsel %vm265, %v215, 0
        %v288 = vsel %vm265, %v216, 0
        %290 = vmatprep.subr.mxu0 0.0
        %291 = vmatpush1.msra.mxu0 0.0
        %292 = vmatprep.subr.mxu0 0.0
        %293 = vmatpush1.msra.mxu0 0.0
        %294 = vmatprep.subr.mxu0 0.0
        %295 = vmatpush1.msra.mxu0 0.0
        %296 = vmatprep.subr.mxu0 0.0
        %297 = vmatpush1.msra.mxu0 0.0
        %298 = vmatprep.subr.mxu0 0.0
        %299 = vmatpush1.msra.mxu0 0.0
        %300 = vmatprep.subr.mxu0 0.0
        %301 = vmatpush1.msra.mxu0 0.0
        %302 = vmatprep.subr.mxu0 0.0
        %303 = vmatpush1.msra.mxu0 0.0
        %304 = vmatprep.subr.mxu0 0.0
        %305 = vmatpush1.msra.mxu0 0.0
        %306 = vmatprep.subr.mxu0 0.0
        %307 = vmatpush1.msra.mxu0 0.0
        %308 = vmatprep.subr.mxu0 0.0
        %309 = vmatpush1.msra.mxu0 0.0
        %310 = vmatprep.subr.mxu0 0.0
        %311 = vmatpush1.msra.mxu0 0.0
        %312 = vmatprep.subr.mxu0 0.0
        %313 = vmatpush1.msra.mxu0 0.0
        %314 = vmatprep.subr.mxu0 0.0
        %315 = vmatpush1.msra.mxu0 0.0
        %316 = vmatprep.subr.mxu0 0.0
        %317 = vmatpush1.msra.mxu0 0.0
        %318 = vmatprep.subr.mxu0 0.0
        %319 = vmatpush1.msra.mxu0 %v208
        %320 = vmatprep.subr.mxu0 0.0
        %321 = vmatpush1.msra.mxu0 %v207
        %322 = vmatprep.subr.mxu0 0.0
        %323 = vmatpush2.msra.mxu0 0.0
        %324 = vmatprep.subr.mxu0 0.0
        %325 = vmatpush2.msra.mxu0 0.0
        %326 = vmatprep.subr.mxu0 0.0
        %327 = vmatpush2.msra.mxu0 0.0
        %328 = vmatprep.subr.mxu0 0.0
        %329 = vmatpush2.msra.mxu0 0.0
        %330 = vmatprep.subr.mxu0 0.0
        %331 = vmatpush2.msra.mxu0 0.0
        %332 = vmatprep.subr.mxu0 0.0
        %333 = vmatpush2.msra.mxu0 0.0
        %334 = vmatprep.subr.mxu0 0.0
        %335 = vmatpush2.msra.mxu0 0.0
        %336 = vmatprep.subr.mxu0 0.0
        %337 = vmatpush2.msra.mxu0 0.0
        %338 = vmatprep.subr.mxu0 0.0
        %339 = vmatpush2.msra.mxu0 0.0
        %340 = vmatprep.subr.mxu0 0.0
        %341 = vmatpush2.msra.mxu0 0.0
        %342 = vmatprep.subr.mxu0 0.0
        %343 = vmatpush2.msra.mxu0 0.0
        %344 = vmatprep.subr.mxu0 0.0
        %345 = vmatpush2.msra.mxu0 0.0
        %346 = vmatprep.subr.mxu0 0.0
        %347 = vmatpush2.msra.mxu0 0.0
        %348 = vmatprep.subr.mxu0 0.0
        %349 = vmatpush2.msra.mxu0 0.0
        %350 = vmatprep.subr.mxu0 0.0
        %351 = vmatpush2.msra.mxu0 0.0
        %352 = vmatprep.subr.mxu0 0.0
        %353 = vmatpush2.msra.mxu0 0.0
        %354 = vmatprep.mubr.f32.mxu0 0.0
        %355 = vmatmul.mubr.f32.gmra.mxu0 %v267
        %v356 = vpop.f32.mrf.mxu0
        %v357 = vadd.f32 %v228, %v356
        %v358 = vpop.f32.mrf.mxu0
        %359 = vmatprep.mubr.f32.mxu0 0.0
        %360 = vmatmul.mubr.f32.gmra.mxu0 %v270
        %v361 = vpop.f32.mrf.mxu0
        %v362 = vadd.f32 %v233, %v361
        %v363 = vpop.f32.mrf.mxu0
        %364 = vmatprep.mubr.f32.mxu0 0.0
        %365 = vmatmul.mubr.f32.gmra.mxu0 %v273
        %v366 = vpop.f32.mrf.mxu0
        %v367 = vadd.f32 %v238, %v366
        %v368 = vpop.f32.mrf.mxu0
        %369 = vmatprep.mubr.f32.mxu0 0.0
        %370 = vmatmul.mubr.f32.gmra.mxu0 %v276
        %v371 = vpop.f32.mrf.mxu0
        %v372 = vadd.f32 %v243, %v371
        %v373 = vpop.f32.mrf.mxu0
        %374 = vmatprep.mubr.f32.mxu0 0.0
        %375 = vmatmul.mubr.f32.gmra.mxu0 %v279
        %v376 = vpop.f32.mrf.mxu0
        %v377 = vadd.f32 %v248, %v376
        %v378 = vpop.f32.mrf.mxu0
        %379 = vmatprep.mubr.f32.mxu0 0.0
        %380 = vmatmul.mubr.f32.gmra.mxu0 %v282
        %v381 = vpop.f32.mrf.mxu0
        %v382 = vadd.f32 %v253, %v381
        %v383 = vpop.f32.mrf.mxu0
        %384 = vmatprep.mubr.f32.mxu0 0.0
        %385 = vmatmul.mubr.f32.gmra.mxu0 %v285
        %v386 = vpop.f32.mrf.mxu0
        %v387 = vadd.f32 %v258, %v386
        %v388 = vpop.f32.mrf.mxu0
        %389 = vmatprep.mubr.f32.mxu0 0.0
        %390 = vmatmul.mubr.f32.gmra.mxu0 %v288
        %v391 = vpop.f32.mrf.mxu0
        %v392 = vadd.f32 %v263, %v391
        %v393 = vpop.f32.mrf.mxu0
        %394 = vdwg.mxu0
        %v395 = vadd.f32 %v357, %v367
        %v396 = vadd.f32 %v362, %v372
        %v397 = vadd.f32 %v395, %v377
        %v398 = vadd.f32 %v396, %v382
        %v399 = vadd.f32 %v397, %v387
        %v400 = vadd.f32 %v398, %v392
        %vm401 = vcmask 523264
        %v402 = vsel %vm401, %v399, 0.0
        %403 = vadd.xlane.f32.xlu0 %v402
        %v404 = vpop.xlane.xlu0 %403
        %v405 = vsel %vm401, %v400, 0.0
        %406 = vadd.xlane.f32.xlu0 %v405
        %v407 = vpop.xlane.xlu0 %406
        %v408 = vmul.f32 %v404, 0.00390625
        %v409 = vmul.f32 %v407, 0.00390625
        %v410 = vsub.f32 %v357, %v408
        %v411 = vsub.f32 %v362, %v409
        %v412 = vsub.f32 %v367, %v408
        %v413 = vsub.f32 %v372, %v409
        %v414 = vsub.f32 %v377, %v408
        %v415 = vsub.f32 %v382, %v409
        %v416 = vsub.f32 %v387, %v408
        %v417 = vsub.f32 %v392, %v409
        %v418 = vmul.f32 %v410, %v410
        %v419 = vmul.f32 %v411, %v411
        %v420 = vmul.f32 %v412, %v412
        %v421 = vmul.f32 %v413, %v413
        %v422 = vadd.f32 %v418, %v420
        %v423 = vadd.f32 %v419, %v421
        %v424 = vmul.f32 %v414, %v414
        %v425 = vmul.f32 %v415, %v415
        %v426 = vadd.f32 %v422, %v424
        %v427 = vadd.f32 %v423, %v425
        %v428 = vmul.f32 %v416, %v416
        %v429 = vmul.f32 %v417, %v417
        %v430 = vadd.f32 %v426, %v428
        %v431 = vadd.f32 %v427, %v429
        %v432 = vsel %vm401, %v430, 0.0
        %433 = vadd.xlane.f32.xlu0 %v432
        %v434 = vpop.xlane.xlu0 %433
        %v435 = vsel %vm401, %v431, 0.0
        %436 = vadd.xlane.f32.xlu0 %v435
        %v437 = vpop.xlane.xlu0 %436
        %v438 = vmul.f32 %v434, 0.00390625
        %v439 = vmul.f32 %v437, 0.00390625
        %v440 = vadd.f32 %v438, 1e-05
        %v441 = vadd.f32 %v439, 1e-05
        %v442 = vrsqrt.pop %v440
        %v443 = vrsqrt.pop %v441
        %v444 = vmul.f32 %v410, %v442
        %v445 = vmul.f32 %v411, %v443
        %v446 = vmax.f32 %v444, 0.0
        %v447 = vmax.f32 %v445, 0.0
        %v448 = vmul.f32 %v412, %v442
        %v449 = vmul.f32 %v413, %v443
        %v450 = vmax.f32 %v448, 0.0
        %v451 = vmax.f32 %v449, 0.0
        %v452 = vmul.f32 %v414, %v442
        %v453 = vmul.f32 %v415, %v443
        %v454 = vmax.f32 %v452, 0.0
        %v455 = vmax.f32 %v453, 0.0
        %v456 = vmul.f32 %v416, %v442
        %v457 = vmul.f32 %v417, %v443
        %v458 = vmax.f32 %v456, 0.0
        %v459 = vmax.f32 %v457, 0.0
        %460 = vst.msk [vmem:[%s194] sm:$0xff] %vm401, %v446
        %461 = vst.msk [vmem:[%s194 + $0x8] sm:$0xff] %vm401, %v447
        %s462 = scalar_lea.vmem %s194, 16 [#allocation2]
        %463 = vst.msk [vmem:[%s462] sm:$0xff] %vm401, %v450
        %464 = vst.msk [vmem:[%s462 + $0x8] sm:$0xff] %vm401, %v451
        %s465 = scalar_lea.vmem %s194, 32 [#allocation2]
        %466 = vst.msk [vmem:[%s465] sm:$0xff] %vm401, %v454
        %467 = vst.msk [vmem:[%s465 + $0x8] sm:$0xff] %vm401, %v455
        %s468 = scalar_lea.vmem %s194, 48 [#allocation2]
        %469 = vst.msk [vmem:[%s468] sm:$0xff] %vm401, %v458
        %470 = vst.msk [vmem:[%s468 + $0x8] sm:$0xff] %vm401, %v459
        %v471 = vmax.f32 %v446, %v450
        %v472 = vmax.f32 %v447, %v451
        %v473 = vmax.f32 %v454, %v458
        %v474 = vmax.f32 %v455, %v459
        %v475 = vmax.f32 %v471, %v473
        %v476 = vmax.f32 %v472, %v474
        %v477 = vsel %vm401, %v475, -inf
        %478 = vmax.xlane.f32.xlu0 %v477
        %v479 = vpop.xlane.xlu0 %478
        %v480 = vsel %vm401, %v476, -inf
        %481 = vmax.xlane.f32.xlu0 %v480
        %v482 = vpop.xlane.xlu0 %481
        %v483 = vsub.f32 %v446, %v479
        %v484 = vsub.f32 %v447, %v482
        %v485 = vmul.f32 %v483, 1.442695
        %v486 = vpow.pop %v485
        %v487 = vmul.f32 %v484, 1.442695
        %v488 = vpow.pop %v487
        %v489 = vsub.f32 %v450, %v479
        %v490 = vsub.f32 %v451, %v482
        %v491 = vmul.f32 %v489, 1.442695
        %v492 = vpow.pop %v491
        %v493 = vmul.f32 %v490, 1.442695
        %v494 = vpow.pop %v493
        %v495 = vsub.f32 %v454, %v479
        %v496 = vsub.f32 %v455, %v482
        %v497 = vmul.f32 %v495, 1.442695
        %v498 = vpow.pop %v497
        %v499 = vmul.f32 %v496, 1.442695
        %v500 = vpow.pop %v499
        %v501 = vsub.f32 %v458, %v479
        %v502 = vsub.f32 %v459, %v482
        %v503 = vmul.f32 %v501, 1.442695
        %v504 = vpow.pop %v503
        %v505 = vmul.f32 %v502, 1.442695
        %v506 = vpow.pop %v505
        %v507 = vadd.f32 %v486, %v492
        %v508 = vadd.f32 %v488, %v494
        %v509 = vadd.f32 %v507, %v498
        %v510 = vadd.f32 %v508, %v500
        %v511 = vadd.f32 %v509, %v504
        %v512 = vadd.f32 %v510, %v506
        %v513 = vsel %vm401, %v511, 0.0
        %514 = vadd.xlane.f32.xlu0 %v513
        %v515 = vpop.xlane.xlu0 %514
        %v516 = vsel %vm401, %v512, 0.0
        %517 = vadd.xlane.f32.xlu0 %v516
        %v518 = vpop.xlane.xlu0 %517
        %v519 = vrcp.pop %v515
        %v520 = vrcp.pop %v518
        %v521 = vlaneseq
        %v522 = vshrl.u32 %v521, 7
        %v523 = vadd.s32 %v522, 8
        %v524 = vmul.f32 %v486, %v519
        %v525 = vmul.f32 %v488, %v520
        %v526 = vsel %vm401, %v524, 0.0
        %v527 = vsel %vm401, %v525, 0.0
        %v528 = vadd.f32 %v526, %v527
        %v529 = vrot.slane %v528, 4
        %v530 = vadd.f32 %v528, %v529
        %v531 = vrot.slane %v530, 2
        %v532 = vadd.f32 %v530, %v531
        %v533 = vrot.slane %v532, 1
        %v534 = vadd.f32 %v532, %v533
        %v535 = vsel %vm401, %v524, inf
        %v536 = vsel %vm401, %v525, inf
        %v537 = vmin.f32 %v535, %v536
        %v538 = vrot.slane %v537, 4
        %v539 = vmin.f32 %v537, %v538
        %v540 = vrot.slane %v539, 2
        %v541 = vmin.f32 %v539, %v540
        %v542 = vrot.slane %v541, 1
        %v543 = vmin.f32 %v541, %v542
        %v544 = vsub.f32 %v534, %v543
        %vm545 = vcmp.eq.f32.partialorder %v524, %v543
        %vm546 = vcmp.eq.f32.partialorder %v525, %v543
        %v547 = vsel %vm545, %v522, 16
        %v548 = vsel %vm546, %v523, 16
        %v549 = vsel %vm401, %v547, 2147483647
        %v550 = vsel %vm401, %v548, 2147483647
        %vm551 = vcmp.lt.s32.totalorder %v549, %v550
        %v552 = vsel %vm551, %v549, %v550
        %v553 = vrot.slane %v552, 4
        %vm554 = vcmp.lt.s32.totalorder %v552, %v553
        %v555 = vsel %vm554, %v552, %v553
        %v556 = vrot.slane %v555, 2
        %vm557 = vcmp.lt.s32.totalorder %v555, %v556
        %v558 = vsel %vm557, %v555, %v556
        %v559 = vrot.slane %v558, 1
        %vm560 = vcmp.lt.s32.totalorder %v558, %v559
        %v561 = vsel %vm560, %v558, %v559
        %vm562 = vcmp.eq.s32.totalorder %v522, %v561
        %vm563 = vcmp.eq.s32.totalorder %v523, %v561
        %v564 = vsel %vm562, 1e+30, %v524
        %v565 = vsel %vm563, 1e+30, %v525
        %v566 = vsel %vm401, %v564, inf
        %v567 = vsel %vm401, %v565, inf
        %v568 = vmin.f32 %v566, %v567
        %v569 = vrot.slane %v568, 4
        %v570 = vmin.f32 %v568, %v569
        %v571 = vrot.slane %v570, 2
        %v572 = vmin.f32 %v570, %v571
        %v573 = vrot.slane %v572, 1
        %v574 = vmin.f32 %v572, %v573
        %v575 = vsub.f32 %v544, %v574
        %vm576 = vcmp.eq.f32.partialorder %v564, %v574
        %vm577 = vcmp.eq.f32.partialorder %v565, %v574
        %v578 = vsel %vm576, %v522, 16
        %v579 = vsel %vm577, %v523, 16
        %v580 = vsel %vm401, %v578, 2147483647
        %v581 = vsel %vm401, %v579, 2147483647
        %vm582 = vcmp.lt.s32.totalorder %v580, %v581
        %v583 = vsel %vm582, %v580, %v581
        %v584 = vrot.slane %v583, 4
        %vm585 = vcmp.lt.s32.totalorder %v583, %v584
        %v586 = vsel %vm585, %v583, %v584
        %v587 = vrot.slane %v586, 2
        %vm588 = vcmp.lt.s32.totalorder %v586, %v587
        %v589 = vsel %vm588, %v586, %v587
        %v590 = vrot.slane %v589, 1
        %vm591 = vcmp.lt.s32.totalorder %v589, %v590
        %v592 = vsel %vm591, %v589, %v590
        %vm593 = vcmp.eq.s32.totalorder %v522, %v592
        %vm594 = vcmp.eq.s32.totalorder %v523, %v592
        %v595 = vsel %vm593, 1e+30, %v564
        %v596 = vsel %vm594, 1e+30, %v565
        %v597 = vsel %vm401, %v595, inf
        %v598 = vsel %vm401, %v596, inf
        %v599 = vmin.f32 %v597, %v598
        %v600 = vrot.slane %v599, 4
        %v601 = vmin.f32 %v599, %v600
        %v602 = vrot.slane %v601, 2
        %v603 = vmin.f32 %v601, %v602
        %v604 = vrot.slane %v603, 1
        %v605 = vmin.f32 %v603, %v604
        %v606 = vsub.f32 %v575, %v605
        %vm607 = vcmp.eq.f32.partialorder %v595, %v605
        %vm608 = vcmp.eq.f32.partialorder %v596, %v605
        %v609 = vsel %vm607, %v522, 16
        %v610 = vsel %vm608, %v523, 16
        %v611 = vsel %vm401, %v609, 2147483647
        %v612 = vsel %vm401, %v610, 2147483647
        %vm613 = vcmp.lt.s32.totalorder %v611, %v612
        %v614 = vsel %vm613, %v611, %v612
        %v615 = vrot.slane %v614, 4
        %vm616 = vcmp.lt.s32.totalorder %v614, %v615
        %v617 = vsel %vm616, %v614, %v615
        %v618 = vrot.slane %v617, 2
        %vm619 = vcmp.lt.s32.totalorder %v617, %v618
        %v620 = vsel %vm619, %v617, %v618
        %v621 = vrot.slane %v620, 1
        %vm622 = vcmp.lt.s32.totalorder %v620, %v621
        %v623 = vsel %vm622, %v620, %v621
        %vm624 = vcmp.eq.s32.totalorder %v522, %v623
        %vm625 = vcmp.eq.s32.totalorder %v523, %v623
        %v626 = vsel %vm624, 1e+30, %v595
        %v627 = vsel %vm625, 1e+30, %v596
        %v628 = vsel %vm401, %v626, inf
        %v629 = vsel %vm401, %v627, inf
        %v630 = vmin.f32 %v628, %v629
        %v631 = vrot.slane %v630, 4
        %v632 = vmin.f32 %v630, %v631
        %v633 = vrot.slane %v632, 2
        %v634 = vmin.f32 %v632, %v633
        %v635 = vrot.slane %v634, 1
        %v636 = vmin.f32 %v634, %v635
        %v637 = vsub.f32 %v606, %v636
        %vm638 = vcmp.eq.f32.partialorder %v626, %v636
        %vm639 = vcmp.eq.f32.partialorder %v627, %v636
        %v640 = vsel %vm638, %v522, 16
        %v641 = vsel %vm639, %v523, 16
        %v642 = vsel %vm401, %v640, 2147483647
        %v643 = vsel %vm401, %v641, 2147483647
        %vm644 = vcmp.lt.s32.totalorder %v642, %v643
        %v645 = vsel %vm644, %v642, %v643
        %v646 = vrot.slane %v645, 4
        %vm647 = vcmp.lt.s32.totalorder %v645, %v646
        %v648 = vsel %vm647, %v645, %v646
        %v649 = vrot.slane %v648, 2
        %vm650 = vcmp.lt.s32.totalorder %v648, %v649
        %v651 = vsel %vm650, %v648, %v649
        %v652 = vrot.slane %v651, 1
        %vm653 = vcmp.lt.s32.totalorder %v651, %v652
        %v654 = vsel %vm653, %v651, %v652
        %vm655 = vcmp.eq.s32.totalorder %v522, %v654
        %vm656 = vcmp.eq.s32.totalorder %v523, %v654
        %v657 = vsel %vm655, 1e+30, %v626
        %v658 = vsel %vm656, 1e+30, %v627
        %v659 = vsel %vm401, %v657, inf
        %v660 = vsel %vm401, %v658, inf
        %v661 = vmin.f32 %v659, %v660
        %v662 = vrot.slane %v661, 4
        %v663 = vmin.f32 %v661, %v662
        %v664 = vrot.slane %v663, 2
        %v665 = vmin.f32 %v663, %v664
        %v666 = vrot.slane %v665, 1
        %v667 = vmin.f32 %v665, %v666
        %v668 = vsub.f32 %v637, %v667
        %vm669 = vcmp.eq.f32.partialorder %v657, %v667
        %vm670 = vcmp.eq.f32.partialorder %v658, %v667
        %v671 = vsel %vm669, %v522, 16
        %v672 = vsel %vm670, %v523, 16
        %v673 = vsel %vm401, %v671, 2147483647
        %v674 = vsel %vm401, %v672, 2147483647
        %vm675 = vcmp.lt.s32.totalorder %v673, %v674
        %v676 = vsel %vm675, %v673, %v674
        %v677 = vrot.slane %v676, 4
        %vm678 = vcmp.lt.s32.totalorder %v676, %v677
        %v679 = vsel %vm678, %v676, %v677
        %v680 = vrot.slane %v679, 2
        %vm681 = vcmp.lt.s32.totalorder %v679, %v680
        %v682 = vsel %vm681, %v679, %v680
        %v683 = vrot.slane %v682, 1
        %vm684 = vcmp.lt.s32.totalorder %v682, %v683
        %v685 = vsel %vm684, %v682, %v683
        %vm686 = vcmp.eq.s32.totalorder %v522, %v685
        %vm687 = vcmp.eq.s32.totalorder %v523, %v685
        %v688 = vsel %vm686, 1e+30, %v657
        %v689 = vsel %vm687, 1e+30, %v658
        %v690 = vsel %vm401, %v688, inf
        %v691 = vsel %vm401, %v689, inf
        %v692 = vmin.f32 %v690, %v691
        %v693 = vrot.slane %v692, 4
        %v694 = vmin.f32 %v692, %v693
        %v695 = vrot.slane %v694, 2
        %v696 = vmin.f32 %v694, %v695
        %v697 = vrot.slane %v696, 1
        %v698 = vmin.f32 %v696, %v697
        %v699 = vsub.f32 %v668, %v698
        %v700 = vmul.f32 %v699, 0.1
        %vm701 = vcmask 516096
        %702 = vst.msk [vmem:[%s201] sm:$0x1] %vm701, %v700
        %v703 = vmul.f32 %v492, %v519
        %v704 = vmul.f32 %v494, %v520
        %v705 = vsel %vm401, %v703, 0.0
        %v706 = vsel %vm401, %v704, 0.0
        %v707 = vadd.f32 %v705, %v706
        %v708 = vrot.slane %v707, 4
        %v709 = vadd.f32 %v707, %v708
        %v710 = vrot.slane %v709, 2
        %v711 = vadd.f32 %v709, %v710
        %v712 = vrot.slane %v711, 1
        %v713 = vadd.f32 %v711, %v712
        %v714 = vsel %vm401, %v703, inf
        %v715 = vsel %vm401, %v704, inf
        %v716 = vmin.f32 %v714, %v715
        %v717 = vrot.slane %v716, 4
        %v718 = vmin.f32 %v716, %v717
        %v719 = vrot.slane %v718, 2
        %v720 = vmin.f32 %v718, %v719
        %v721 = vrot.slane %v720, 1
        %v722 = vmin.f32 %v720, %v721
        %v723 = vsub.f32 %v713, %v722
        %vm724 = vcmp.eq.f32.partialorder %v703, %v722
        %vm725 = vcmp.eq.f32.partialorder %v704, %v722
        %v726 = vsel %vm724, %v522, 16
        %v727 = vsel %vm725, %v523, 16
        %v728 = vsel %vm401, %v726, 2147483647
        %v729 = vsel %vm401, %v727, 2147483647
        %vm730 = vcmp.lt.s32.totalorder %v728, %v729
        %v731 = vsel %vm730, %v728, %v729
        %v732 = vrot.slane %v731, 4
        %vm733 = vcmp.lt.s32.totalorder %v731, %v732
        %v734 = vsel %vm733, %v731, %v732
        %v735 = vrot.slane %v734, 2
        %vm736 = vcmp.lt.s32.totalorder %v734, %v735
        %v737 = vsel %vm736, %v734, %v735
        %v738 = vrot.slane %v737, 1
        %vm739 = vcmp.lt.s32.totalorder %v737, %v738
        %v740 = vsel %vm739, %v737, %v738
        %vm741 = vcmp.eq.s32.totalorder %v522, %v740
        %vm742 = vcmp.eq.s32.totalorder %v523, %v740
        %v743 = vsel %vm741, 1e+30, %v703
        %v744 = vsel %vm742, 1e+30, %v704
        %v745 = vsel %vm401, %v743, inf
        %v746 = vsel %vm401, %v744, inf
        %v747 = vmin.f32 %v745, %v746
        %v748 = vrot.slane %v747, 4
        %v749 = vmin.f32 %v747, %v748
        %v750 = vrot.slane %v749, 2
        %v751 = vmin.f32 %v749, %v750
        %v752 = vrot.slane %v751, 1
        %v753 = vmin.f32 %v751, %v752
        %v754 = vsub.f32 %v723, %v753
        %vm755 = vcmp.eq.f32.partialorder %v743, %v753
        %vm756 = vcmp.eq.f32.partialorder %v744, %v753
        %v757 = vsel %vm755, %v522, 16
        %v758 = vsel %vm756, %v523, 16
        %v759 = vsel %vm401, %v757, 2147483647
        %v760 = vsel %vm401, %v758, 2147483647
        %vm761 = vcmp.lt.s32.totalorder %v759, %v760
        %v762 = vsel %vm761, %v759, %v760
        %v763 = vrot.slane %v762, 4
        %vm764 = vcmp.lt.s32.totalorder %v762, %v763
        %v765 = vsel %vm764, %v762, %v763
        %v766 = vrot.slane %v765, 2
        %vm767 = vcmp.lt.s32.totalorder %v765, %v766
        %v768 = vsel %vm767, %v765, %v766
        %v769 = vrot.slane %v768, 1
        %vm770 = vcmp.lt.s32.totalorder %v768, %v769
        %v771 = vsel %vm770, %v768, %v769
        %vm772 = vcmp.eq.s32.totalorder %v522, %v771
        %vm773 = vcmp.eq.s32.totalorder %v523, %v771
        %v774 = vsel %vm772, 1e+30, %v743
        %v775 = vsel %vm773, 1e+30, %v744
        %v776 = vsel %vm401, %v774, inf
        %v777 = vsel %vm401, %v775, inf
        %v778 = vmin.f32 %v776, %v777
        %v779 = vrot.slane %v778, 4
        %v780 = vmin.f32 %v778, %v779
        %v781 = vrot.slane %v780, 2
        %v782 = vmin.f32 %v780, %v781
        %v783 = vrot.slane %v782, 1
        %v784 = vmin.f32 %v782, %v783
        %v785 = vsub.f32 %v754, %v784
        %vm786 = vcmp.eq.f32.partialorder %v774, %v784
        %vm787 = vcmp.eq.f32.partialorder %v775, %v784
        %v788 = vsel %vm786, %v522, 16
        %v789 = vsel %vm787, %v523, 16
        %v790 = vsel %vm401, %v788, 2147483647
        %v791 = vsel %vm401, %v789, 2147483647
        %vm792 = vcmp.lt.s32.totalorder %v790, %v791
        %v793 = vsel %vm792, %v790, %v791
        %v794 = vrot.slane %v793, 4
        %vm795 = vcmp.lt.s32.totalorder %v793, %v794
        %v796 = vsel %vm795, %v793, %v794
        %v797 = vrot.slane %v796, 2
        %vm798 = vcmp.lt.s32.totalorder %v796, %v797
        %v799 = vsel %vm798, %v796, %v797
        %v800 = vrot.slane %v799, 1
        %vm801 = vcmp.lt.s32.totalorder %v799, %v800
        %v802 = vsel %vm801, %v799, %v800
        %vm803 = vcmp.eq.s32.totalorder %v522, %v802
        %vm804 = vcmp.eq.s32.totalorder %v523, %v802
        %v805 = vsel %vm803, 1e+30, %v774
        %v806 = vsel %vm804, 1e+30, %v775
        %v807 = vsel %vm401, %v805, inf
        %v808 = vsel %vm401, %v806, inf
        %v809 = vmin.f32 %v807, %v808
        %v810 = vrot.slane %v809, 4
        %v811 = vmin.f32 %v809, %v810
        %v812 = vrot.slane %v811, 2
        %v813 = vmin.f32 %v811, %v812
        %v814 = vrot.slane %v813, 1
        %v815 = vmin.f32 %v813, %v814
        %v816 = vsub.f32 %v785, %v815
        %vm817 = vcmp.eq.f32.partialorder %v805, %v815
        %vm818 = vcmp.eq.f32.partialorder %v806, %v815
        %v819 = vsel %vm817, %v522, 16
        %v820 = vsel %vm818, %v523, 16
        %v821 = vsel %vm401, %v819, 2147483647
        %v822 = vsel %vm401, %v820, 2147483647
        %vm823 = vcmp.lt.s32.totalorder %v821, %v822
        %v824 = vsel %vm823, %v821, %v822
        %v825 = vrot.slane %v824, 4
        %vm826 = vcmp.lt.s32.totalorder %v824, %v825
        %v827 = vsel %vm826, %v824, %v825
        %v828 = vrot.slane %v827, 2
        %vm829 = vcmp.lt.s32.totalorder %v827, %v828
        %v830 = vsel %vm829, %v827, %v828
        %v831 = vrot.slane %v830, 1
        %vm832 = vcmp.lt.s32.totalorder %v830, %v831
        %v833 = vsel %vm832, %v830, %v831
        %vm834 = vcmp.eq.s32.totalorder %v522, %v833
        %vm835 = vcmp.eq.s32.totalorder %v523, %v833
        %v836 = vsel %vm834, 1e+30, %v805
        %v837 = vsel %vm835, 1e+30, %v806
        %v838 = vsel %vm401, %v836, inf
        %v839 = vsel %vm401, %v837, inf
        %v840 = vmin.f32 %v838, %v839
        %v841 = vrot.slane %v840, 4
        %v842 = vmin.f32 %v840, %v841
        %v843 = vrot.slane %v842, 2
        %v844 = vmin.f32 %v842, %v843
        %v845 = vrot.slane %v844, 1
        %v846 = vmin.f32 %v844, %v845
        %v847 = vsub.f32 %v816, %v846
        %vm848 = vcmp.eq.f32.partialorder %v836, %v846
        %vm849 = vcmp.eq.f32.partialorder %v837, %v846
        %v850 = vsel %vm848, %v522, 16
        %v851 = vsel %vm849, %v523, 16
        %v852 = vsel %vm401, %v850, 2147483647
        %v853 = vsel %vm401, %v851, 2147483647
        %vm854 = vcmp.lt.s32.totalorder %v852, %v853
        %v855 = vsel %vm854, %v852, %v853
        %v856 = vrot.slane %v855, 4
        %vm857 = vcmp.lt.s32.totalorder %v855, %v856
        %v858 = vsel %vm857, %v855, %v856
        %v859 = vrot.slane %v858, 2
        %vm860 = vcmp.lt.s32.totalorder %v858, %v859
        %v861 = vsel %vm860, %v858, %v859
        %v862 = vrot.slane %v861, 1
        %vm863 = vcmp.lt.s32.totalorder %v861, %v862
        %v864 = vsel %vm863, %v861, %v862
        %vm865 = vcmp.eq.s32.totalorder %v522, %v864
        %vm866 = vcmp.eq.s32.totalorder %v523, %v864
        %v867 = vsel %vm865, 1e+30, %v836
        %v868 = vsel %vm866, 1e+30, %v837
        %v869 = vsel %vm401, %v867, inf
        %v870 = vsel %vm401, %v868, inf
        %v871 = vmin.f32 %v869, %v870
        %v872 = vrot.slane %v871, 4
        %v873 = vmin.f32 %v871, %v872
        %v874 = vrot.slane %v873, 2
        %v875 = vmin.f32 %v873, %v874
        %v876 = vrot.slane %v875, 1
        %v877 = vmin.f32 %v875, %v876
        %v878 = vsub.f32 %v847, %v877
        %v879 = vmul.f32 %v878, 0.1
        %s880 = scalar_lea.vmem %s201, 1 [#allocation4]
        %881 = vst.msk [vmem:[%s880] sm:$0x1] %vm701, %v879
        %v882 = vmul.f32 %v498, %v519
        %v883 = vmul.f32 %v500, %v520
        %v884 = vsel %vm401, %v882, 0.0
        %v885 = vsel %vm401, %v883, 0.0
        %v886 = vadd.f32 %v884, %v885
        %v887 = vrot.slane %v886, 4
        %v888 = vadd.f32 %v886, %v887
        %v889 = vrot.slane %v888, 2
        %v890 = vadd.f32 %v888, %v889
        %v891 = vrot.slane %v890, 1
        %v892 = vadd.f32 %v890, %v891
        %v893 = vsel %vm401, %v882, inf
        %v894 = vsel %vm401, %v883, inf
        %v895 = vmin.f32 %v893, %v894
        %v896 = vrot.slane %v895, 4
        %v897 = vmin.f32 %v895, %v896
        %v898 = vrot.slane %v897, 2
        %v899 = vmin.f32 %v897, %v898
        %v900 = vrot.slane %v899, 1
        %v901 = vmin.f32 %v899, %v900
        %v902 = vsub.f32 %v892, %v901
        %vm903 = vcmp.eq.f32.partialorder %v882, %v901
        %vm904 = vcmp.eq.f32.partialorder %v883, %v901
        %v905 = vsel %vm903, %v522, 16
        %v906 = vsel %vm904, %v523, 16
        %v907 = vsel %vm401, %v905, 2147483647
        %v908 = vsel %vm401, %v906, 2147483647
        %vm909 = vcmp.lt.s32.totalorder %v907, %v908
        %v910 = vsel %vm909, %v907, %v908
        %v911 = vrot.slane %v910, 4
        %vm912 = vcmp.lt.s32.totalorder %v910, %v911
        %v913 = vsel %vm912, %v910, %v911
        %v914 = vrot.slane %v913, 2
        %vm915 = vcmp.lt.s32.totalorder %v913, %v914
        %v916 = vsel %vm915, %v913, %v914
        %v917 = vrot.slane %v916, 1
        %vm918 = vcmp.lt.s32.totalorder %v916, %v917
        %v919 = vsel %vm918, %v916, %v917
        %vm920 = vcmp.eq.s32.totalorder %v522, %v919
        %vm921 = vcmp.eq.s32.totalorder %v523, %v919
        %v922 = vsel %vm920, 1e+30, %v882
        %v923 = vsel %vm921, 1e+30, %v883
        %v924 = vsel %vm401, %v922, inf
        %v925 = vsel %vm401, %v923, inf
        %v926 = vmin.f32 %v924, %v925
        %v927 = vrot.slane %v926, 4
        %v928 = vmin.f32 %v926, %v927
        %v929 = vrot.slane %v928, 2
        %v930 = vmin.f32 %v928, %v929
        %v931 = vrot.slane %v930, 1
        %v932 = vmin.f32 %v930, %v931
        %v933 = vsub.f32 %v902, %v932
        %vm934 = vcmp.eq.f32.partialorder %v922, %v932
        %vm935 = vcmp.eq.f32.partialorder %v923, %v932
        %v936 = vsel %vm934, %v522, 16
        %v937 = vsel %vm935, %v523, 16
        %v938 = vsel %vm401, %v936, 2147483647
        %v939 = vsel %vm401, %v937, 2147483647
        %vm940 = vcmp.lt.s32.totalorder %v938, %v939
        %v941 = vsel %vm940, %v938, %v939
        %v942 = vrot.slane %v941, 4
        %vm943 = vcmp.lt.s32.totalorder %v941, %v942
        %v944 = vsel %vm943, %v941, %v942
        %v945 = vrot.slane %v944, 2
        %vm946 = vcmp.lt.s32.totalorder %v944, %v945
        %v947 = vsel %vm946, %v944, %v945
        %v948 = vrot.slane %v947, 1
        %vm949 = vcmp.lt.s32.totalorder %v947, %v948
        %v950 = vsel %vm949, %v947, %v948
        %vm951 = vcmp.eq.s32.totalorder %v522, %v950
        %vm952 = vcmp.eq.s32.totalorder %v523, %v950
        %v953 = vsel %vm951, 1e+30, %v922
        %v954 = vsel %vm952, 1e+30, %v923
        %v955 = vsel %vm401, %v953, inf
        %v956 = vsel %vm401, %v954, inf
        %v957 = vmin.f32 %v955, %v956
        %v958 = vrot.slane %v957, 4
        %v959 = vmin.f32 %v957, %v958
        %v960 = vrot.slane %v959, 2
        %v961 = vmin.f32 %v959, %v960
        %v962 = vrot.slane %v961, 1
        %v963 = vmin.f32 %v961, %v962
        %v964 = vsub.f32 %v933, %v963
        %vm965 = vcmp.eq.f32.partialorder %v953, %v963
        %vm966 = vcmp.eq.f32.partialorder %v954, %v963
        %v967 = vsel %vm965, %v522, 16
        %v968 = vsel %vm966, %v523, 16
        %v969 = vsel %vm401, %v967, 2147483647
        %v970 = vsel %vm401, %v968, 2147483647
        %vm971 = vcmp.lt.s32.totalorder %v969, %v970
        %v972 = vsel %vm971, %v969, %v970
        %v973 = vrot.slane %v972, 4
        %vm974 = vcmp.lt.s32.totalorder %v972, %v973
        %v975 = vsel %vm974, %v972, %v973
        %v976 = vrot.slane %v975, 2
        %vm977 = vcmp.lt.s32.totalorder %v975, %v976
        %v978 = vsel %vm977, %v975, %v976
        %v979 = vrot.slane %v978, 1
        %vm980 = vcmp.lt.s32.totalorder %v978, %v979
        %v981 = vsel %vm980, %v978, %v979
        %vm982 = vcmp.eq.s32.totalorder %v522, %v981
        %vm983 = vcmp.eq.s32.totalorder %v523, %v981
        %v984 = vsel %vm982, 1e+30, %v953
        %v985 = vsel %vm983, 1e+30, %v954
        %v986 = vsel %vm401, %v984, inf
        %v987 = vsel %vm401, %v985, inf
        %v988 = vmin.f32 %v986, %v987
        %v989 = vrot.slane %v988, 4
        %v990 = vmin.f32 %v988, %v989
        %v991 = vrot.slane %v990, 2
        %v992 = vmin.f32 %v990, %v991
        %v993 = vrot.slane %v992, 1
        %v994 = vmin.f32 %v992, %v993
        %v995 = vsub.f32 %v964, %v994
        %vm996 = vcmp.eq.f32.partialorder %v984, %v994
        %vm997 = vcmp.eq.f32.partialorder %v985, %v994
        %v998 = vsel %vm996, %v522, 16
        %v999 = vsel %vm997, %v523, 16
        %v1000 = vsel %vm401, %v998, 2147483647
        %v1001 = vsel %vm401, %v999, 2147483647
        %vm1002 = vcmp.lt.s32.totalorder %v1000, %v1001
        %v1003 = vsel %vm1002, %v1000, %v1001
        %v1004 = vrot.slane %v1003, 4
        %vm1005 = vcmp.lt.s32.totalorder %v1003, %v1004
        %v1006 = vsel %vm1005, %v1003, %v1004
        %v1007 = vrot.slane %v1006, 2
        %vm1008 = vcmp.lt.s32.totalorder %v1006, %v1007
        %v1009 = vsel %vm1008, %v1006, %v1007
        %v1010 = vrot.slane %v1009, 1
        %vm1011 = vcmp.lt.s32.totalorder %v1009, %v1010
        %v1012 = vsel %vm1011, %v1009, %v1010
        %vm1013 = vcmp.eq.s32.totalorder %v522, %v1012
        %vm1014 = vcmp.eq.s32.totalorder %v523, %v1012
        %v1015 = vsel %vm1013, 1e+30, %v984
        %v1016 = vsel %vm1014, 1e+30, %v985
        %v1017 = vsel %vm401, %v1015, inf
        %v1018 = vsel %vm401, %v1016, inf
        %v1019 = vmin.f32 %v1017, %v1018
        %v1020 = vrot.slane %v1019, 4
        %v1021 = vmin.f32 %v1019, %v1020
        %v1022 = vrot.slane %v1021, 2
        %v1023 = vmin.f32 %v1021, %v1022
        %v1024 = vrot.slane %v1023, 1
        %v1025 = vmin.f32 %v1023, %v1024
        %v1026 = vsub.f32 %v995, %v1025
        %vm1027 = vcmp.eq.f32.partialorder %v1015, %v1025
        %vm1028 = vcmp.eq.f32.partialorder %v1016, %v1025
        %v1029 = vsel %vm1027, %v522, 16
        %v1030 = vsel %vm1028, %v523, 16
        %v1031 = vsel %vm401, %v1029, 2147483647
        %v1032 = vsel %vm401, %v1030, 2147483647
        %vm1033 = vcmp.lt.s32.totalorder %v1031, %v1032
        %v1034 = vsel %vm1033, %v1031, %v1032
        %v1035 = vrot.slane %v1034, 4
        %vm1036 = vcmp.lt.s32.totalorder %v1034, %v1035
        %v1037 = vsel %vm1036, %v1034, %v1035
        %v1038 = vrot.slane %v1037, 2
        %vm1039 = vcmp.lt.s32.totalorder %v1037, %v1038
        %v1040 = vsel %vm1039, %v1037, %v1038
        %v1041 = vrot.slane %v1040, 1
        %vm1042 = vcmp.lt.s32.totalorder %v1040, %v1041
        %v1043 = vsel %vm1042, %v1040, %v1041
        %vm1044 = vcmp.eq.s32.totalorder %v522, %v1043
        %vm1045 = vcmp.eq.s32.totalorder %v523, %v1043
        %v1046 = vsel %vm1044, 1e+30, %v1015
        %v1047 = vsel %vm1045, 1e+30, %v1016
        %v1048 = vsel %vm401, %v1046, inf
        %v1049 = vsel %vm401, %v1047, inf
        %v1050 = vmin.f32 %v1048, %v1049
        %v1051 = vrot.slane %v1050, 4
        %v1052 = vmin.f32 %v1050, %v1051
        %v1053 = vrot.slane %v1052, 2
        %v1054 = vmin.f32 %v1052, %v1053
        %v1055 = vrot.slane %v1054, 1
        %v1056 = vmin.f32 %v1054, %v1055
        %v1057 = vsub.f32 %v1026, %v1056
        %v1058 = vmul.f32 %v1057, 0.1
        %s1059 = scalar_lea.vmem %s201, 2 [#allocation4]
        %1060 = vst.msk [vmem:[%s1059] sm:$0x1] %vm701, %v1058
        %v1061 = vmul.f32 %v504, %v519
        %v1062 = vmul.f32 %v506, %v520
        %v1063 = vsel %vm401, %v1061, 0.0
        %v1064 = vsel %vm401, %v1062, 0.0
        %v1065 = vadd.f32 %v1063, %v1064
        %v1066 = vrot.slane %v1065, 4
        %v1067 = vadd.f32 %v1065, %v1066
        %v1068 = vrot.slane %v1067, 2
        %v1069 = vadd.f32 %v1067, %v1068
        %v1070 = vrot.slane %v1069, 1
        %v1071 = vadd.f32 %v1069, %v1070
        %v1072 = vsel %vm401, %v1061, inf
        %v1073 = vsel %vm401, %v1062, inf
        %v1074 = vmin.f32 %v1072, %v1073
        %v1075 = vrot.slane %v1074, 4
        %v1076 = vmin.f32 %v1074, %v1075
        %v1077 = vrot.slane %v1076, 2
        %v1078 = vmin.f32 %v1076, %v1077
        %v1079 = vrot.slane %v1078, 1
        %v1080 = vmin.f32 %v1078, %v1079
        %v1081 = vsub.f32 %v1071, %v1080
        %vm1082 = vcmp.eq.f32.partialorder %v1061, %v1080
        %vm1083 = vcmp.eq.f32.partialorder %v1062, %v1080
        %v1084 = vsel %vm1082, %v522, 16
        %v1085 = vsel %vm1083, %v523, 16
        %v1086 = vsel %vm401, %v1084, 2147483647
        %v1087 = vsel %vm401, %v1085, 2147483647
        %vm1088 = vcmp.lt.s32.totalorder %v1086, %v1087
        %v1089 = vsel %vm1088, %v1086, %v1087
        %v1090 = vrot.slane %v1089, 4
        %vm1091 = vcmp.lt.s32.totalorder %v1089, %v1090
        %v1092 = vsel %vm1091, %v1089, %v1090
        %v1093 = vrot.slane %v1092, 2
        %vm1094 = vcmp.lt.s32.totalorder %v1092, %v1093
        %v1095 = vsel %vm1094, %v1092, %v1093
        %v1096 = vrot.slane %v1095, 1
        %vm1097 = vcmp.lt.s32.totalorder %v1095, %v1096
        %v1098 = vsel %vm1097, %v1095, %v1096
        %vm1099 = vcmp.eq.s32.totalorder %v522, %v1098
        %vm1100 = vcmp.eq.s32.totalorder %v523, %v1098
        %v1101 = vsel %vm1099, 1e+30, %v1061
        %v1102 = vsel %vm1100, 1e+30, %v1062
        %v1103 = vsel %vm401, %v1101, inf
        %v1104 = vsel %vm401, %v1102, inf
        %v1105 = vmin.f32 %v1103, %v1104
        %v1106 = vrot.slane %v1105, 4
        %v1107 = vmin.f32 %v1105, %v1106
        %v1108 = vrot.slane %v1107, 2
        %v1109 = vmin.f32 %v1107, %v1108
        %v1110 = vrot.slane %v1109, 1
        %v1111 = vmin.f32 %v1109, %v1110
        %v1112 = vsub.f32 %v1081, %v1111
        %vm1113 = vcmp.eq.f32.partialorder %v1101, %v1111
        %vm1114 = vcmp.eq.f32.partialorder %v1102, %v1111
        %v1115 = vsel %vm1113, %v522, 16
        %v1116 = vsel %vm1114, %v523, 16
        %v1117 = vsel %vm401, %v1115, 2147483647
        %v1118 = vsel %vm401, %v1116, 2147483647
        %vm1119 = vcmp.lt.s32.totalorder %v1117, %v1118
        %v1120 = vsel %vm1119, %v1117, %v1118
        %v1121 = vrot.slane %v1120, 4
        %vm1122 = vcmp.lt.s32.totalorder %v1120, %v1121
        %v1123 = vsel %vm1122, %v1120, %v1121
        %v1124 = vrot.slane %v1123, 2
        %vm1125 = vcmp.lt.s32.totalorder %v1123, %v1124
        %v1126 = vsel %vm1125, %v1123, %v1124
        %v1127 = vrot.slane %v1126, 1
        %vm1128 = vcmp.lt.s32.totalorder %v1126, %v1127
        %v1129 = vsel %vm1128, %v1126, %v1127
        %vm1130 = vcmp.eq.s32.totalorder %v522, %v1129
        %vm1131 = vcmp.eq.s32.totalorder %v523, %v1129
        %v1132 = vsel %vm1130, 1e+30, %v1101
        %v1133 = vsel %vm1131, 1e+30, %v1102
        %v1134 = vsel %vm401, %v1132, inf
        %v1135 = vsel %vm401, %v1133, inf
        %v1136 = vmin.f32 %v1134, %v1135
        %v1137 = vrot.slane %v1136, 4
        %v1138 = vmin.f32 %v1136, %v1137
        %v1139 = vrot.slane %v1138, 2
        %v1140 = vmin.f32 %v1138, %v1139
        %v1141 = vrot.slane %v1140, 1
        %v1142 = vmin.f32 %v1140, %v1141
        %v1143 = vsub.f32 %v1112, %v1142
        %vm1144 = vcmp.eq.f32.partialorder %v1132, %v1142
        %vm1145 = vcmp.eq.f32.partialorder %v1133, %v1142
        %v1146 = vsel %vm1144, %v522, 16
        %v1147 = vsel %vm1145, %v523, 16
        %v1148 = vsel %vm401, %v1146, 2147483647
        %v1149 = vsel %vm401, %v1147, 2147483647
        %vm1150 = vcmp.lt.s32.totalorder %v1148, %v1149
        %v1151 = vsel %vm1150, %v1148, %v1149
        %v1152 = vrot.slane %v1151, 4
        %vm1153 = vcmp.lt.s32.totalorder %v1151, %v1152
        %v1154 = vsel %vm1153, %v1151, %v1152
        %v1155 = vrot.slane %v1154, 2
        %vm1156 = vcmp.lt.s32.totalorder %v1154, %v1155
        %v1157 = vsel %vm1156, %v1154, %v1155
        %v1158 = vrot.slane %v1157, 1
        %vm1159 = vcmp.lt.s32.totalorder %v1157, %v1158
        %v1160 = vsel %vm1159, %v1157, %v1158
        %vm1161 = vcmp.eq.s32.totalorder %v522, %v1160
        %vm1162 = vcmp.eq.s32.totalorder %v523, %v1160
        %v1163 = vsel %vm1161, 1e+30, %v1132
        %v1164 = vsel %vm1162, 1e+30, %v1133
        %v1165 = vsel %vm401, %v1163, inf
        %v1166 = vsel %vm401, %v1164, inf
        %v1167 = vmin.f32 %v1165, %v1166
        %v1168 = vrot.slane %v1167, 4
        %v1169 = vmin.f32 %v1167, %v1168
        %v1170 = vrot.slane %v1169, 2
        %v1171 = vmin.f32 %v1169, %v1170
        %v1172 = vrot.slane %v1171, 1
        %v1173 = vmin.f32 %v1171, %v1172
        %v1174 = vsub.f32 %v1143, %v1173
        %vm1175 = vcmp.eq.f32.partialorder %v1163, %v1173
        %vm1176 = vcmp.eq.f32.partialorder %v1164, %v1173
        %v1177 = vsel %vm1175, %v522, 16
        %v1178 = vsel %vm1176, %v523, 16
        %v1179 = vsel %vm401, %v1177, 2147483647
        %v1180 = vsel %vm401, %v1178, 2147483647
        %vm1181 = vcmp.lt.s32.totalorder %v1179, %v1180
        %v1182 = vsel %vm1181, %v1179, %v1180
        %v1183 = vrot.slane %v1182, 4
        %vm1184 = vcmp.lt.s32.totalorder %v1182, %v1183
        %v1185 = vsel %vm1184, %v1182, %v1183
        %v1186 = vrot.slane %v1185, 2
        %vm1187 = vcmp.lt.s32.totalorder %v1185, %v1186
        %v1188 = vsel %vm1187, %v1185, %v1186
        %v1189 = vrot.slane %v1188, 1
        %vm1190 = vcmp.lt.s32.totalorder %v1188, %v1189
        %v1191 = vsel %vm1190, %v1188, %v1189
        %vm1192 = vcmp.eq.s32.totalorder %v522, %v1191
        %vm1193 = vcmp.eq.s32.totalorder %v523, %v1191
        %v1194 = vsel %vm1192, 1e+30, %v1163
        %v1195 = vsel %vm1193, 1e+30, %v1164
        %v1196 = vsel %vm401, %v1194, inf
        %v1197 = vsel %vm401, %v1195, inf
        %v1198 = vmin.f32 %v1196, %v1197
        %v1199 = vrot.slane %v1198, 4
        %v1200 = vmin.f32 %v1198, %v1199
        %v1201 = vrot.slane %v1200, 2
        %v1202 = vmin.f32 %v1200, %v1201
        %v1203 = vrot.slane %v1202, 1
        %v1204 = vmin.f32 %v1202, %v1203
        %v1205 = vsub.f32 %v1174, %v1204
        %vm1206 = vcmp.eq.f32.partialorder %v1194, %v1204
        %vm1207 = vcmp.eq.f32.partialorder %v1195, %v1204
        %v1208 = vsel %vm1206, %v522, 16
        %v1209 = vsel %vm1207, %v523, 16
        %v1210 = vsel %vm401, %v1208, 2147483647
        %v1211 = vsel %vm401, %v1209, 2147483647
        %vm1212 = vcmp.lt.s32.totalorder %v1210, %v1211
        %v1213 = vsel %vm1212, %v1210, %v1211
        %v1214 = vrot.slane %v1213, 4
        %vm1215 = vcmp.lt.s32.totalorder %v1213, %v1214
        %v1216 = vsel %vm1215, %v1213, %v1214
        %v1217 = vrot.slane %v1216, 2
        %vm1218 = vcmp.lt.s32.totalorder %v1216, %v1217
        %v1219 = vsel %vm1218, %v1216, %v1217
        %v1220 = vrot.slane %v1219, 1
        %vm1221 = vcmp.lt.s32.totalorder %v1219, %v1220
        %v1222 = vsel %vm1221, %v1219, %v1220
        %vm1223 = vcmp.eq.s32.totalorder %v522, %v1222
        %vm1224 = vcmp.eq.s32.totalorder %v523, %v1222
        %v1225 = vsel %vm1223, 1e+30, %v1194
        %v1226 = vsel %vm1224, 1e+30, %v1195
        %v1227 = vsel %vm401, %v1225, inf
        %v1228 = vsel %vm401, %v1226, inf
        %v1229 = vmin.f32 %v1227, %v1228
        %v1230 = vrot.slane %v1229, 4
        %v1231 = vmin.f32 %v1229, %v1230
        %v1232 = vrot.slane %v1231, 2
        %v1233 = vmin.f32 %v1231, %v1232
        %v1234 = vrot.slane %v1233, 1
        %v1235 = vmin.f32 %v1233, %v1234
        %v1236 = vsub.f32 %v1205, %v1235
        %v1237 = vmul.f32 %v1236, 0.1
        %s1238 = scalar_lea.vmem %s201, 3 [#allocation4]
        %1239 = vst.msk [vmem:[%s1238] sm:$0x1] %vm701, %v1237
        %s1240 = sand.u32 %s98, 1
        %s1241 = scalar_lea.sflag [#allocation3], %s1240
        %s1242 = sand.u32 %s98, 1
        %s1243 = smul.addr %s1242, 64
        %s1244 = scalar_lea.vmem [#allocation2], %s1243
        %s1245 = sand.u32 %s124, 1
        %s1246 = scalar_lea.sflag [#allocation5], %s1245
        %s1247 = sand.u32 %s124, 1
        %s1248 = smul.addr %s1247, 4
        %s1249 = scalar_lea.vmem [#allocation4], %s1248
        // Predicated region
        $region33: #{tpu_custom_call.1} parent=31 // pred_check
          %p1250 = pneg %p108
        $region34: #{tpu_custom_call.1} parent=31 // pred_check_branch
          %1252 = sbr.rel (%p1250) target = $region36
        $region35: #{tpu_custom_call.1} parent=31 // pred_region
          %s1254 = ssub.s32 1024, 1024
          %1255 = vsyncadd %s1241, %s1254
          %s1256 = smul.addr %s22, 8
          %s1257 = smul.addr %s1256, 128
          %s1258 = scalar_lea.hbm %s3, %s1257
          %s1259 = sshll.u32 %s1244, 4
          %s1260 = int_to_ptr.vmem [resolvable:$true] %s1259
          %1265 = dma.vmem_to_hbm [thread:$0]  %s1260, 1024, %s1258, %s1241, 128, 128, 8
        $region36: #{tpu_custom_call.1} parent=31 // pred_fallthru
          _
        // Predicated region
        $region37: #{tpu_custom_call.1} parent=31 // pred_check
          %p1266 = pneg %p134
        $region38: #{tpu_custom_call.1} parent=31 // pred_check_branch
          %1268 = sbr.rel (%p1266) target = $region40
        $region39: #{tpu_custom_call.1} parent=31 // pred_region
          %s1270 = ssub.s32 64, 64
          %1271 = vsyncadd %s1246, %s1270
          %s1272 = smul.addr %s22, 4
          %s1273 = smul.addr %s1272, 16
          %s1274 = scalar_lea.hbm %s4, %s1273
          %s1275 = sshll.u32 %s1249, 4
          %s1276 = int_to_ptr.vmem [resolvable:$true] %s1275
          %1281 = dma.vmem_to_hbm [thread:$0]  %s1276, 64, %s1274, %s1246, 16, 16, 1
        $region40: #{tpu_custom_call.1} parent=31 // pred_fallthru
          _
      $region32: #{tpu_custom_call.1} parent=5 // pred_fallthru
        _
      %p1282 = scmp.le.s32.totalorder 2, %s17
      // Predicated region
      $region41: #{tpu_custom_call.1} parent=5 // pred_check
        %p1283 = pneg %p1282
      $region42: #{tpu_custom_call.1} parent=5 // pred_check_branch
        %1285 = sbr.rel (%p1283) target = $region44
      $region43: #{tpu_custom_call.1} parent=5 // pred_region
        %s1286 = ssub.s32 %s17, 2
        // Predicated region
        $region45: #{tpu_custom_call.1} parent=43 // pred_check
          %p1287 = pneg %p114
        $region46: #{tpu_custom_call.1} parent=43 // pred_check_branch
          %1289 = sbr.rel (%p1287) target = $region48
        $region47: #{tpu_custom_call.1} parent=43 // pred_region
          %s1290 = sand.u32 %s99, 1
          %s1291 = scalar_lea.sflag [#allocation3], %s1290
          %s1292 = sand.u32 %s99, 1
          %s1293 = smul.addr %s1292, 64
          %s1294 = scalar_lea.vmem [#allocation2], %s1293
          %1295 = dma.done %s1291, 1024
        $region48: #{tpu_custom_call.1} parent=43 // pred_fallthru
          _
        // Predicated region
        $region49: #{tpu_custom_call.1} parent=43 // pred_check
          %p1296 = pneg %p140
        $region50: #{tpu_custom_call.1} parent=43 // pred_check_branch
          %1298 = sbr.rel (%p1296) target = $region52
        $region51: #{tpu_custom_call.1} parent=43 // pred_region
          %s1299 = sand.u32 %s125, 1
          %s1300 = scalar_lea.sflag [#allocation5], %s1299
          %s1301 = sand.u32 %s125, 1
          %s1302 = smul.addr %s1301, 4
          %s1303 = scalar_lea.vmem [#allocation4], %s1302
          %1304 = dma.done %s1300, 64
        $region52: #{tpu_custom_call.1} parent=43 // pred_fallthru
          _
      $region44: #{tpu_custom_call.1} parent=5 // pred_fallthru
        _
    $region6: #{tpu_custom_call.1} parent=1 // loop_footer
      %s21 = sadd.s32 1, %s17
    $region7: #{tpu_custom_call.1} parent=1 // loop_footer_branch
      %16 = sbr.rel target = $region3
    $region8: #{tpu_custom_call.1} parent=1 // loop_exit
      _
    %1305 = vsyncpa [#allocation3], 1
    %s1306 = scalar_lea.sflag [#allocation3], 1
    %1307 = vsyncpa %s1306, 1
    %1308 = vsyncpa [#allocation5], 1
    %s1309 = scalar_lea.sflag [#allocation5], 1
    %1310 = vsyncpa %s1309, 1

</llo_original>
